<compile_context>
chip_gen: v7x
topology: tpu7x:2x2x1
jax: 0.10.0
libtpu: 0.0.40
codegen_flags: <defaults>
</compile_context>

<pallas_src>
import math

import jax
import jax.numpy as jnp
from jax.experimental import pallas as pl
from jax.experimental.pallas import tpu as pltpu


def nf_forward_kernel(xT_ref, w1_ref, b1_ref, w2_ref, b2_ref,
                      zT_ref, stats_ref):
    """Forward pass (transposed layout: batch on lanes).

    xT_ref    : [D, TB]        input tile, features on sublanes, batch on lanes
    w1_ref    : [K, H, D//2]   conditioner layer-1 weights (pre-transposed)
    b1_ref    : [K, H, 1]      conditioner layer-1 bias
    w2_ref    : [K, D, H]      conditioner layer-2 weights (outputs s|t)
    b2_ref    : [K, D, 1]      conditioner layer-2 bias
    zT_ref    : [D, TB]        transformed samples z (transposed)
    stats_ref : [2, TB]        row 0 = prior log-prob, row 1 = log|det J|
    """
    D = xT_ref.shape[0]
    half = D // 2
    K = w1_ref.shape[0]

    # Two halves kept as separate values; sublane slices are 8-aligned for f32.
    x0 = xT_ref[:half, :]          # conditioning half  [half, TB]
    x1 = xT_ref[half:, :]          # transformed half   [half, TB]

    s_acc = jnp.zeros_like(x0)     # deferred log-det accumulator [half, TB]

    # K is small & static -> unrolled Python loop (2 MXU matmuls per flow).
    for k in range(K):
        hdn = jnp.tanh(
            jnp.dot(w1_ref[k], x0, preferred_element_type=jnp.float32)
            + b1_ref[k])                               # [H, TB]
        st = (jnp.dot(w2_ref[k], hdn, preferred_element_type=jnp.float32)
              + b2_ref[k])                             # [D, TB]
        s = jnp.tanh(st[:half, :])                     # bounded log-scale
        t = st[half:, :]
        z1 = x1 * jnp.exp(s) + t
        # swap halves (pure variable swap; no data movement)
        x0, x1 = z1, x0
        s_acc = s_acc + s

    # Final z written with two sublane-aligned half-stores (no concat).
    zT_ref[:half, :] = x0
    zT_ref[half:, :] = x1

    # Prior: standard multivariate normal log-prob; reductions over sublanes,
    # outputs stay lane-dense (128-wide rows).
    logp = (-0.5 * jnp.sum(x0 * x0 + x1 * x1, axis=0, keepdims=True)
            - 0.5 * D * math.log(2.0 * math.pi))       # [1, TB]
    logdet = jnp.sum(s_acc, axis=0, keepdims=True)     # [1, TB]
    stats_ref[...] = jnp.concatenate([logp, logdet], axis=0)


def _pick_batch_tile(B):
    """Largest 128-multiple tile dividing B; prefer >=2 grid steps (megacore)."""
    for cand in (512, 256, 128):
        if B % cand == 0 and B // cand >= 2:
            return cand
    for cand in (512, 256, 128):
        if B % cand == 0:
            return cand
    return B  # small / odd batch: single full-extent block


def normalizing_flow_forward(x, w1, b1, w2, b2):
    """x: [B, D]; w1: [K, D/2, H]; b1: [K, 1, H]; w2: [K, H, D]; b2: [K, 1, D]."""
    B, D = x.shape
    assert D % 2 == 0, "coupling flows require an even feature dimension"

    # One-time layout plumbing in the wrapper: batch onto lanes, weights
    # transposed so the kernel does  hdn = w1T @ x0T,  st = w2T @ hdn.
    xT = x.T.astype(jnp.float32)          # [D, B]
    w1T = jnp.transpose(w1, (0, 2, 1))    # [K, H, D/2]
    b1T = jnp.transpose(b1, (0, 2, 1))    # [K, H, 1]
    w2T = jnp.transpose(w2, (0, 2, 1))    # [K, D, H]
    b2T = jnp.transpose(b2, (0, 2, 1))    # [K, D, 1]

    tb = _pick_batch_tile(B)
    grid = (pl.cdiv(B, tb),)

    zT, stats = pl.pallas_call(
        nf_forward_kernel,
        out_shape=(
            jax.ShapeDtypeStruct((D, B), jnp.float32),
            jax.ShapeDtypeStruct((2, B), jnp.float32),
        ),
        grid=grid,
        in_specs=[
            pl.BlockSpec((D, tb), lambda i: (0, i)),
            # Weights/biases: same block every step -> VMEM-resident across grid.
            pl.BlockSpec(w1T.shape, lambda i: (0, 0, 0)),
            pl.BlockSpec(b1T.shape, lambda i: (0, 0, 0)),
            pl.BlockSpec(w2T.shape, lambda i: (0, 0, 0)),
            pl.BlockSpec(b2T.shape, lambda i: (0, 0, 0)),
        ],
        out_specs=(
            pl.BlockSpec((D, tb), lambda i: (0, i)),
            pl.BlockSpec((2, tb), lambda i: (0, i)),
        ),
        compiler_params=pltpu.CompilerParams(
            dimension_semantics=("parallel",),
            # Tiny working set; explicit limit keeps sizing valid on v7x
            # (64 MiB physical VMEM per TensorCore).
            vmem_limit_bytes=32 * 1024 * 1024,
        ),
    )(xT, w1T, b1T, w2T, b2T)

    # Match PyTorch return shapes: z [m, d], prior_logprob [m], log_det [m]
    return zT.T, stats[0], stats[1]


def reference_forward(x, w1, b1, w2, b2):
    """Pure-JAX reference (same math, original [B, D] layout)."""
    B, D = x.shape
    half = D // 2
    K = w1.shape[0]
    logdet = jnp.zeros((B,), jnp.float32)
    for k in range(K):
        x0, x1 = x[:, :half], x[:, half:]
        hdn = jnp.tanh(x0 @ w1[k] + b1[k])
        st = hdn @ w2[k] + b2[k]
        s = jnp.tanh(st[:, :half])
        t = st[:, half:]
        z1 = x1 * jnp.exp(s) + t
        x = jnp.concatenate([z1, x0], axis=1)
        logdet = logdet + jnp.sum(s, axis=1)
    logp = -0.5 * jnp.sum(x * x, axis=1) - 0.5 * D * math.log(2.0 * math.pi)
    return x, logp, logdet


if __name__ == "__main__":
    # batch, feature dim, conditioner hidden, n_flows
    B, D, H, K = 256, 16, 32, 4
    half = D // 2

    key = jax.random.PRNGKey(0)
    kx, kw1, kw2 = jax.random.split(key, 3)

    x = jax.random.normal(kx, (B, D), dtype=jnp.float32)

    # Deterministic parameter init for K coupling-layer conditioner MLPs.
    w1 = jax.random.normal(kw1, (K, half, H), dtype=jnp.float32) * 0.1
    b1 = jnp.zeros((K, 1, H), dtype=jnp.float32)
    w2 = jax.random.normal(kw2, (K, H, D), dtype=jnp.float32) * 0.1
    b2 = jnp.zeros((K, 1, D), dtype=jnp.float32)

    z, prior_logprob, log_det = jax.block_until_ready(
        normalizing_flow_forward(x, w1, b1, w2, b2))

    z_ref, logp_ref, logdet_ref = reference_forward(x, w1, b1, w2, b2)
    assert jnp.allclose(z, z_ref, atol=1e-5, rtol=1e-5)
    assert jnp.allclose(prior_logprob, logp_ref, atol=1e-5, rtol=1e-5)
    assert jnp.allclose(log_det, logdet_ref, atol=1e-5, rtol=1e-5)

    print("KERNEL_OK")
</pallas_src>

<mosaic_0001>
module attributes {stable_mosaic.version = 11 : i64} {
  func.func @nf_forward_kernel(%arg0: i32, %arg1: memref<16x128xf32, #tpu.memory_space<vmem>>, %arg2: memref<4x32x8xf32, #tpu.memory_space<vmem>>, %arg3: memref<4x32x1xf32, #tpu.memory_space<vmem>>, %arg4: memref<4x16x32xf32, #tpu.memory_space<vmem>>, %arg5: memref<4x16x1xf32, #tpu.memory_space<vmem>>, %arg6: memref<16x128xf32, #tpu.memory_space<vmem>>, %arg7: memref<2x128xf32, #tpu.memory_space<vmem>>) attributes {dimension_semantics = [#tpu.dimension_semantics<parallel>], iteration_bounds = array<i64: 2>, scalar_prefetch = 0 : i64, scratch_operands = 0 : i64, tpu.core_type = #tpu.core_type<tc>, window_params = [{transform_indices = @transform_0, window_bounds = array<i64: 16, 128>}, {pipeline_mode = #tpu.pipeline_mode<synchronous>, transform_indices = @transform_1, window_bounds = array<i64: 4, 32, 8>}, {pipeline_mode = #tpu.pipeline_mode<synchronous>, transform_indices = @transform_2, window_bounds = array<i64: 4, 32, 1>}, {pipeline_mode = #tpu.pipeline_mode<synchronous>, transform_indices = @transform_3, window_bounds = array<i64: 4, 16, 32>}, {pipeline_mode = #tpu.pipeline_mode<synchronous>, transform_indices = @transform_4, window_bounds = array<i64: 4, 16, 1>}, {transform_indices = @transform_5, window_bounds = array<i64: 16, 128>}, {transform_indices = @transform_6, window_bounds = array<i64: 2, 128>}]} {
    %c0 = arith.constant 0 : index
    %c0_0 = arith.constant 0 : index
    %0 = vector.load %arg1[%c0, %c0_0] : memref<16x128xf32, #tpu.memory_space<vmem>>, vector<8x128xf32>
    %c8 = arith.constant 8 : index
    %c0_1 = arith.constant 0 : index
    %1 = vector.load %arg1[%c8, %c0_1] : memref<16x128xf32, #tpu.memory_space<vmem>>, vector<8x128xf32>
    %cst = arith.constant 0.000000e+00 : f32
    %2 = vector.broadcast %cst : f32 to vector<8x128xf32>
    %c0_2 = arith.constant 0 : index
    %c0_3 = arith.constant 0 : index
    %c0_4 = arith.constant 0 : index
    %3 = vector.load %arg2[%c0_2, %c0_3, %c0_4] : memref<4x32x8xf32, #tpu.memory_space<vmem>>, vector<1x32x8xf32>
    %4 = vector.shape_cast %3 : vector<1x32x8xf32> to vector<32x8xf32>
    %cst_5 = arith.constant dense<0.000000e+00> : vector<32x128xf32>
    %5 = tpu.matmul %4, %0, %cst_5 {dimension_numbers = #tpu.dot_dimension_numbers<[1], [0], [0], [1], [0, 0, 1, 1], [], []>} : vector<32x8xf32>, vector<8x128xf32>, vector<32x128xf32> -> vector<32x128xf32>
    %c0_6 = arith.constant 0 : index
    %c0_7 = arith.constant 0 : index
    %c0_8 = arith.constant 0 : index
    %6 = vector.load %arg3[%c0_6, %c0_7, %c0_8] : memref<4x32x1xf32, #tpu.memory_space<vmem>>, vector<1x32x1xf32>
    %7 = vector.shape_cast %6 : vector<1x32x1xf32> to vector<32x1xf32>
    %8 = vector.broadcast %7 : vector<32x1xf32> to vector<32x128xf32>
    %9 = arith.addf %5, %8 : vector<32x128xf32>
    %10 = math.tanh %9 : vector<32x128xf32>
    %c0_9 = arith.constant 0 : index
    %c0_10 = arith.constant 0 : index
    %c0_11 = arith.constant 0 : index
    %11 = vector.load %arg4[%c0_9, %c0_10, %c0_11] : memref<4x16x32xf32, #tpu.memory_space<vmem>>, vector<1x16x32xf32>
    %12 = vector.shape_cast %11 : vector<1x16x32xf32> to vector<16x32xf32>
    %cst_12 = arith.constant dense<0.000000e+00> : vector<16x128xf32>
    %13 = tpu.matmul %12, %10, %cst_12 {dimension_numbers = #tpu.dot_dimension_numbers<[1], [0], [0], [1], [0, 0, 1, 1], [], []>} : vector<16x32xf32>, vector<32x128xf32>, vector<16x128xf32> -> vector<16x128xf32>
    %c0_13 = arith.constant 0 : index
    %c0_14 = arith.constant 0 : index
    %c0_15 = arith.constant 0 : index
    %14 = vector.load %arg5[%c0_13, %c0_14, %c0_15] : memref<4x16x1xf32, #tpu.memory_space<vmem>>, vector<1x16x1xf32>
    %15 = vector.shape_cast %14 : vector<1x16x1xf32> to vector<16x1xf32>
    %16 = vector.broadcast %15 : vector<16x1xf32> to vector<16x128xf32>
    %17 = arith.addf %13, %16 : vector<16x128xf32>
    %18 = vector.extract_strided_slice %17 {offsets = [0, 0], sizes = [8, 128], strides = [1, 1]} : vector<16x128xf32> to vector<8x128xf32>
    %19 = math.tanh %18 : vector<8x128xf32>
    %20 = vector.extract_strided_slice %17 {offsets = [8, 0], sizes = [8, 128], strides = [1, 1]} : vector<16x128xf32> to vector<8x128xf32>
    %21 = math.exp %19 : vector<8x128xf32>
    %22 = arith.mulf %1, %21 : vector<8x128xf32>
    %23 = arith.addf %22, %20 : vector<8x128xf32>
    %24 = arith.addf %2, %19 : vector<8x128xf32>
    %c1 = arith.constant 1 : index
    %c0_16 = arith.constant 0 : index
    %c0_17 = arith.constant 0 : index
    %25 = vector.load %arg2[%c1, %c0_16, %c0_17] : memref<4x32x8xf32, #tpu.memory_space<vmem>>, vector<1x32x8xf32>
    %26 = vector.shape_cast %25 : vector<1x32x8xf32> to vector<32x8xf32>
    %cst_18 = arith.constant dense<0.000000e+00> : vector<32x128xf32>
    %27 = tpu.matmul %26, %23, %cst_18 {dimension_numbers = #tpu.dot_dimension_numbers<[1], [0], [0], [1], [0, 0, 1, 1], [], []>} : vector<32x8xf32>, vector<8x128xf32>, vector<32x128xf32> -> vector<32x128xf32>
    %c1_19 = arith.constant 1 : index
    %c0_20 = arith.constant 0 : index
    %c0_21 = arith.constant 0 : index
    %28 = vector.load %arg3[%c1_19, %c0_20, %c0_21] : memref<4x32x1xf32, #tpu.memory_space<vmem>>, vector<1x32x1xf32>
    %29 = vector.shape_cast %28 : vector<1x32x1xf32> to vector<32x1xf32>
    %30 = vector.broadcast %29 : vector<32x1xf32> to vector<32x128xf32>
    %31 = arith.addf %27, %30 : vector<32x128xf32>
    %32 = math.tanh %31 : vector<32x128xf32>
    %c1_22 = arith.constant 1 : index
    %c0_23 = arith.constant 0 : index
    %c0_24 = arith.constant 0 : index
    %33 = vector.load %arg4[%c1_22, %c0_23, %c0_24] : memref<4x16x32xf32, #tpu.memory_space<vmem>>, vector<1x16x32xf32>
    %34 = vector.shape_cast %33 : vector<1x16x32xf32> to vector<16x32xf32>
    %cst_25 = arith.constant dense<0.000000e+00> : vector<16x128xf32>
    %35 = tpu.matmul %34, %32, %cst_25 {dimension_numbers = #tpu.dot_dimension_numbers<[1], [0], [0], [1], [0, 0, 1, 1], [], []>} : vector<16x32xf32>, vector<32x128xf32>, vector<16x128xf32> -> vector<16x128xf32>
    %c1_26 = arith.constant 1 : index
    %c0_27 = arith.constant 0 : index
    %c0_28 = arith.constant 0 : index
    %36 = vector.load %arg5[%c1_26, %c0_27, %c0_28] : memref<4x16x1xf32, #tpu.memory_space<vmem>>, vector<1x16x1xf32>
    %37 = vector.shape_cast %36 : vector<1x16x1xf32> to vector<16x1xf32>
    %38 = vector.broadcast %37 : vector<16x1xf32> to vector<16x128xf32>
    %39 = arith.addf %35, %38 : vector<16x128xf32>
    %40 = vector.extract_strided_slice %39 {offsets = [0, 0], sizes = [8, 128], strides = [1, 1]} : vector<16x128xf32> to vector<8x128xf32>
    %41 = math.tanh %40 : vector<8x128xf32>
    %42 = vector.extract_strided_slice %39 {offsets = [8, 0], sizes = [8, 128], strides = [1, 1]} : vector<16x128xf32> to vector<8x128xf32>
    %43 = math.exp %41 : vector<8x128xf32>
    %44 = arith.mulf %0, %43 : vector<8x128xf32>
    %45 = arith.addf %44, %42 : vector<8x128xf32>
    %46 = arith.addf %24, %41 : vector<8x128xf32>
    %c2 = arith.constant 2 : index
    %c0_29 = arith.constant 0 : index
    %c0_30 = arith.constant 0 : index
    %47 = vector.load %arg2[%c2, %c0_29, %c0_30] : memref<4x32x8xf32, #tpu.memory_space<vmem>>, vector<1x32x8xf32>
    %48 = vector.shape_cast %47 : vector<1x32x8xf32> to vector<32x8xf32>
    %cst_31 = arith.constant dense<0.000000e+00> : vector<32x128xf32>
    %49 = tpu.matmul %48, %45, %cst_31 {dimension_numbers = #tpu.dot_dimension_numbers<[1], [0], [0], [1], [0, 0, 1, 1], [], []>} : vector<32x8xf32>, vector<8x128xf32>, vector<32x128xf32> -> vector<32x128xf32>
    %c2_32 = arith.constant 2 : index
    %c0_33 = arith.constant 0 : index
    %c0_34 = arith.constant 0 : index
    %50 = vector.load %arg3[%c2_32, %c0_33, %c0_34] : memref<4x32x1xf32, #tpu.memory_space<vmem>>, vector<1x32x1xf32>
    %51 = vector.shape_cast %50 : vector<1x32x1xf32> to vector<32x1xf32>
    %52 = vector.broadcast %51 : vector<32x1xf32> to vector<32x128xf32>
    %53 = arith.addf %49, %52 : vector<32x128xf32>
    %54 = math.tanh %53 : vector<32x128xf32>
    %c2_35 = arith.constant 2 : index
    %c0_36 = arith.constant 0 : index
    %c0_37 = arith.constant 0 : index
    %55 = vector.load %arg4[%c2_35, %c0_36, %c0_37] : memref<4x16x32xf32, #tpu.memory_space<vmem>>, vector<1x16x32xf32>
    %56 = vector.shape_cast %55 : vector<1x16x32xf32> to vector<16x32xf32>
    %cst_38 = arith.constant dense<0.000000e+00> : vector<16x128xf32>
    %57 = tpu.matmul %56, %54, %cst_38 {dimension_numbers = #tpu.dot_dimension_numbers<[1], [0], [0], [1], [0, 0, 1, 1], [], []>} : vector<16x32xf32>, vector<32x128xf32>, vector<16x128xf32> -> vector<16x128xf32>
    %c2_39 = arith.constant 2 : index
    %c0_40 = arith.constant 0 : index
    %c0_41 = arith.constant 0 : index
    %58 = vector.load %arg5[%c2_39, %c0_40, %c0_41] : memref<4x16x1xf32, #tpu.memory_space<vmem>>, vector<1x16x1xf32>
    %59 = vector.shape_cast %58 : vector<1x16x1xf32> to vector<16x1xf32>
    %60 = vector.broadcast %59 : vector<16x1xf32> to vector<16x128xf32>
    %61 = arith.addf %57, %60 : vector<16x128xf32>
    %62 = vector.extract_strided_slice %61 {offsets = [0, 0], sizes = [8, 128], strides = [1, 1]} : vector<16x128xf32> to vector<8x128xf32>
    %63 = math.tanh %62 : vector<8x128xf32>
    %64 = vector.extract_strided_slice %61 {offsets = [8, 0], sizes = [8, 128], strides = [1, 1]} : vector<16x128xf32> to vector<8x128xf32>
    %65 = math.exp %63 : vector<8x128xf32>
    %66 = arith.mulf %23, %65 : vector<8x128xf32>
    %67 = arith.addf %66, %64 : vector<8x128xf32>
    %68 = arith.addf %46, %63 : vector<8x128xf32>
    %c3 = arith.constant 3 : index
    %c0_42 = arith.constant 0 : index
    %c0_43 = arith.constant 0 : index
    %69 = vector.load %arg2[%c3, %c0_42, %c0_43] : memref<4x32x8xf32, #tpu.memory_space<vmem>>, vector<1x32x8xf32>
    %70 = vector.shape_cast %69 : vector<1x32x8xf32> to vector<32x8xf32>
    %cst_44 = arith.constant dense<0.000000e+00> : vector<32x128xf32>
    %71 = tpu.matmul %70, %67, %cst_44 {dimension_numbers = #tpu.dot_dimension_numbers<[1], [0], [0], [1], [0, 0, 1, 1], [], []>} : vector<32x8xf32>, vector<8x128xf32>, vector<32x128xf32> -> vector<32x128xf32>
    %c3_45 = arith.constant 3 : index
    %c0_46 = arith.constant 0 : index
    %c0_47 = arith.constant 0 : index
    %72 = vector.load %arg3[%c3_45, %c0_46, %c0_47] : memref<4x32x1xf32, #tpu.memory_space<vmem>>, vector<1x32x1xf32>
    %73 = vector.shape_cast %72 : vector<1x32x1xf32> to vector<32x1xf32>
    %74 = vector.broadcast %73 : vector<32x1xf32> to vector<32x128xf32>
    %75 = arith.addf %71, %74 : vector<32x128xf32>
    %76 = math.tanh %75 : vector<32x128xf32>
    %c3_48 = arith.constant 3 : index
    %c0_49 = arith.constant 0 : index
    %c0_50 = arith.constant 0 : index
    %77 = vector.load %arg4[%c3_48, %c0_49, %c0_50] : memref<4x16x32xf32, #tpu.memory_space<vmem>>, vector<1x16x32xf32>
    %78 = vector.shape_cast %77 : vector<1x16x32xf32> to vector<16x32xf32>
    %cst_51 = arith.constant dense<0.000000e+00> : vector<16x128xf32>
    %79 = tpu.matmul %78, %76, %cst_51 {dimension_numbers = #tpu.dot_dimension_numbers<[1], [0], [0], [1], [0, 0, 1, 1], [], []>} : vector<16x32xf32>, vector<32x128xf32>, vector<16x128xf32> -> vector<16x128xf32>
    %c3_52 = arith.constant 3 : index
    %c0_53 = arith.constant 0 : index
    %c0_54 = arith.constant 0 : index
    %80 = vector.load %arg5[%c3_52, %c0_53, %c0_54] : memref<4x16x1xf32, #tpu.memory_space<vmem>>, vector<1x16x1xf32>
    %81 = vector.shape_cast %80 : vector<1x16x1xf32> to vector<16x1xf32>
    %82 = vector.broadcast %81 : vector<16x1xf32> to vector<16x128xf32>
    %83 = arith.addf %79, %82 : vector<16x128xf32>
    %84 = vector.extract_strided_slice %83 {offsets = [0, 0], sizes = [8, 128], strides = [1, 1]} : vector<16x128xf32> to vector<8x128xf32>
    %85 = math.tanh %84 : vector<8x128xf32>
    %86 = vector.extract_strided_slice %83 {offsets = [8, 0], sizes = [8, 128], strides = [1, 1]} : vector<16x128xf32> to vector<8x128xf32>
    %87 = math.exp %85 : vector<8x128xf32>
    %88 = arith.mulf %45, %87 : vector<8x128xf32>
    %89 = arith.addf %88, %86 : vector<8x128xf32>
    %90 = arith.addf %68, %85 : vector<8x128xf32>
    %c0_55 = arith.constant 0 : index
    %c0_56 = arith.constant 0 : index
    %91 = vector.load %arg6[%c0_55, %c0_56] : memref<16x128xf32, #tpu.memory_space<vmem>>, vector<8x128xf32>
    tpu.vector_store %arg6[%c0_55, %c0_56], %89 {strides = array<i32>} : memref<16x128xf32, #tpu.memory_space<vmem>>, vector<8x128xf32>,
    %c8_57 = arith.constant 8 : index
    %c0_58 = arith.constant 0 : index
    %92 = vector.load %arg6[%c8_57, %c0_58] : memref<16x128xf32, #tpu.memory_space<vmem>>, vector<8x128xf32>
    tpu.vector_store %arg6[%c8_57, %c0_58], %67 {strides = array<i32>} : memref<16x128xf32, #tpu.memory_space<vmem>>, vector<8x128xf32>,
    %93 = arith.mulf %89, %89 : vector<8x128xf32>
    %94 = arith.mulf %67, %67 : vector<8x128xf32>
    %95 = arith.addf %93, %94 : vector<8x128xf32>
    %cst_59 = arith.constant dense<0.000000e+00> : vector<128xf32>
    %96 = vector.multi_reduction <add>, %95, %cst_59 [0] : vector<8x128xf32> to vector<128xf32>
    %97 = vector.shape_cast %96 : vector<128xf32> to vector<1x128xf32>
    %cst_60 = arith.constant -5.000000e-01 : f32
    %98 = vector.broadcast %cst_60 : f32 to vector<1x128xf32>
    %99 = arith.mulf %98, %97 : vector<1x128xf32>
    %cst_61 = arith.constant 14.7030163 : f32
    %100 = vector.broadcast %cst_61 : f32 to vector<1x128xf32>
    %101 = arith.subf %99, %100 : vector<1x128xf32>
    %cst_62 = arith.constant dense<0.000000e+00> : vector<128xf32>
    %102 = vector.multi_reduction <add>, %90, %cst_62 [0] : vector<8x128xf32> to vector<128xf32>
    %103 = vector.shape_cast %102 : vector<128xf32> to vector<1x128xf32>
    %104 = tpu.concatenate %101, %103 in 0 : vector<1x128xf32>, vector<1x128xf32> -> vector<2x128xf32>
    %c0_63 = arith.constant 0 : index
    %c0_64 = arith.constant 0 : index
    %105 = vector.load %arg7[%c0_63, %c0_64] : memref<2x128xf32, #tpu.memory_space<vmem>>, vector<2x128xf32>
    tpu.vector_store %arg7[%c0_63, %c0_64], %104 {strides = array<i32>} : memref<2x128xf32, #tpu.memory_space<vmem>>, vector<2x128xf32>,
    return
  }
  func.func @transform_0(%arg0: i32) -> (i32, i32) {
    %c0_i32 = arith.constant 0 : i32
    %c0_i32_0 = arith.constant 0 : i32
    return %c0_i32, %arg0 : i32, i32
  }
  func.func @transform_1(%arg0: i32) -> (i32, i32, i32) {
    %c0_i32 = arith.constant 0 : i32
    %c0_i32_0 = arith.constant 0 : i32
    %c0_i32_1 = arith.constant 0 : i32
    %c0_i32_2 = arith.constant 0 : i32
    return %c0_i32, %c0_i32_0, %c0_i32_1 : i32, i32, i32
  }
  func.func @transform_2(%arg0: i32) -> (i32, i32, i32) {
    %c0_i32 = arith.constant 0 : i32
    %c0_i32_0 = arith.constant 0 : i32
    %c0_i32_1 = arith.constant 0 : i32
    %c0_i32_2 = arith.constant 0 : i32
    return %c0_i32, %c0_i32_0, %c0_i32_1 : i32, i32, i32
  }
  func.func @transform_3(%arg0: i32) -> (i32, i32, i32) {
    %c0_i32 = arith.constant 0 : i32
    %c0_i32_0 = arith.constant 0 : i32
    %c0_i32_1 = arith.constant 0 : i32
    %c0_i32_2 = arith.constant 0 : i32
    return %c0_i32, %c0_i32_0, %c0_i32_1 : i32, i32, i32
  }
  func.func @transform_4(%arg0: i32) -> (i32, i32, i32) {
    %c0_i32 = arith.constant 0 : i32
    %c0_i32_0 = arith.constant 0 : i32
    %c0_i32_1 = arith.constant 0 : i32
    %c0_i32_2 = arith.constant 0 : i32
    return %c0_i32, %c0_i32_0, %c0_i32_1 : i32, i32, i32
  }
  func.func @transform_5(%arg0: i32) -> (i32, i32) {
    %c0_i32 = arith.constant 0 : i32
    %c0_i32_0 = arith.constant 0 : i32
    return %c0_i32, %arg0 : i32, i32
  }
  func.func @transform_6(%arg0: i32) -> (i32, i32) {
    %c0_i32 = arith.constant 0 : i32
    %c0_i32_0 = arith.constant 0 : i32
    return %c0_i32, %arg0 : i32, i32
  }
}

</mosaic_0001>

<llo_original>
// kernel: tpu_custom_call.1
$region0: #{tpu_custom_call.1}
  #allocation0 [shape = 'u32[]', space=smem, size = 0x4, offset = 0x4, fixed_abs, tag = 'smem constant byte address 0x4 - core index']
  #allocation1 [shape = 'u32[144,128]{1,0:T(1,128)}', space=vmem, size = 0x12000, scoped, tag = 'internal scratch']
  %s0 = inlined_call_operand.vmem [shape: f32[16,256], index: 0, kind: input, shape index: {}]
  %s1 = inlined_call_operand.vmem [shape: f32[4,32,8], index: 1, kind: input, shape index: {}]
  %s2 = inlined_call_operand.vmem [shape: f32[4,32,1], index: 2, kind: input, shape index: {}]
  %s3 = inlined_call_operand.vmem [shape: f32[4,16,32], index: 3, kind: input, shape index: {}]
  %s4 = inlined_call_operand.vmem [shape: f32[4,16,1], index: 4, kind: input, shape index: {}]
  %s5 = inlined_call_operand.hbm [shape: f32[16,256], index: 5, kind: output, shape index: {0}]
  %s6 = inlined_call_operand.hbm [shape: f32[2,256], index: 6, kind: output, shape index: {1}]
  %7 = xla_tuple %s5, %s6
  %s8 = sld [smem:[#allocation0]]
  $region99: #{tpu_custom_call.1} parent=0
    _
  %s10 = ssub.s32 1, %s8
  %s11 = scalar_select 0, %s10, %s8
  $region1: #{tpu_custom_call.1} parent=0
    #allocation2 [shape = 'u8[16384]{0}', space=vmem, size = 0x4000, scoped, tag = 'input window, operand 0']
    #allocation3 [shape = 'u8[16384]{0}', space=vmem, size = 0x4000, scoped, tag = 'output window, operand 0']
    #allocation4 [shape = 's32[2]{0}', space=sflag, size = 0x8, scoped, tag = 'scoped memory for tpu_custom_call.1']
    #allocation5 [shape = 'u8[2048]{0}', space=vmem, size = 0x800, scoped, tag = 'output window, operand 1']
    #allocation6 [shape = 's32[2]{0}', space=sflag, size = 0x8, scoped, tag = 'scoped memory for tpu_custom_call.1']
    %12 = vsyncpa [#allocation4], 0
    %s13 = scalar_lea.sflag [#allocation4], 1
    %14 = vsyncpa %s13, 0
    %15 = vsyncpa [#allocation6], 0
    %s16 = scalar_lea.sflag [#allocation6], 1
    %17 = vsyncpa %s16, 0
    loop: start=0, step=1, limit=4
    $region2: #{tpu_custom_call.1} parent=1 // loop_pre_header
      _
    $region3: #{tpu_custom_call.1} parent=1 // loop_header
      %s19 = sphi 0, %s23
      %p20 = scmp.ge.s32.totalorder %s19, 4
      %s29 = sphi 0, %s31
      %s32 = sphi 0, %s29
      %s33 = sphi 0, %s32
      %s49 = sphi 0, %s33
      %s53 = sphi 0, %s53
      %s55 = sphi 0, %s53
      %s56 = sphi 0, %s55
      %s70 = sphi 0, %s56
      %s74 = sphi 0, %s74
      %s76 = sphi 0, %s74
      %s77 = sphi 0, %s76
      %s91 = sphi 0, %s77
      %s95 = sphi 0, %s95
      %s97 = sphi 0, %s95
      %s98 = sphi 0, %s97
      %s112 = sphi 0, %s98
      %s116 = sphi 0, %s116
      %s118 = sphi 0, %s116
      %s119 = sphi 0, %s118
      %s133 = sphi 0, %s119
      %s139 = sphi 0, %s141
      %s142 = sphi 0, %s139
      %s143 = sphi 0, %s142
      %s159 = sphi 0, %s143
      %s165 = sphi 0, %s167
      %s168 = sphi 0, %s165
      %s169 = sphi 0, %s168
      %s185 = sphi 0, %s169
    $region4: #{tpu_custom_call.1} parent=1 // loop_header_branch
      %22 = sbr.rel (%p20) target = $region8
    $region5: #{tpu_custom_call.1} parent=1 // loop_body
      %s24 = ssub.s32 %s19, 1
      %s25 = ssub.s32 %s19, 2
      %s26 = sadd.s32 %s19, 1
      %s27 = ssub.s32 %s19, %s26
      %p28 = scmp.eq.s32.totalorder %s27, 0
      %s30 = sadd.s32 %s29, 1
      %s31 = scalar_select %p28, %s29, %s30
      %p34 = pneg %p28
      %p35 = scmp.eq.s32.totalorder %s19, 1
      %p36 = por %p34, %p35
      %p37 = scmp.ne.s32.totalorder %s29, %s32
      %p38 = scmp.eq.s32.totalorder %s19, 0
      %p39 = por %p37, %p38
      %p40 = scmp.ne.s32.totalorder %s29, %s32
      %p41 = scmp.eq.s32.totalorder %s24, 1
      %p42 = por %p40, %p41
      %p43 = scmp.ne.s32.totalorder %s32, %s33
      %p44 = scmp.eq.s32.totalorder %s24, 0
      %p45 = por %p43, %p44
      %p46 = scmp.ne.s32.totalorder %s32, %s33
      %p47 = scmp.eq.s32.totalorder %s25, 1
      %p48 = por %p46, %p47
      %p50 = scmp.ne.s32.totalorder %s33, %s49
      %p51 = scmp.eq.s32.totalorder %s25, 0
      %p52 = por %p50, %p51
      %s54 = sadd.s32 %s53, 1
      %p57 = scmp.eq.s32.totalorder %s19, 1
      %p58 = scmp.ne.s32.totalorder %s53, %s55
      %p59 = scmp.eq.s32.totalorder %s19, 0
      %p60 = por %p58, %p59
      %p61 = scmp.ne.s32.totalorder %s53, %s55
      %p62 = scmp.eq.s32.totalorder %s24, 1
      %p63 = por %p61, %p62
      %p64 = scmp.ne.s32.totalorder %s55, %s56
      %p65 = scmp.eq.s32.totalorder %s24, 0
      %p66 = por %p64, %p65
      %p67 = scmp.ne.s32.totalorder %s55, %s56
      %p68 = scmp.eq.s32.totalorder %s25, 1
      %p69 = por %p67, %p68
      %p71 = scmp.ne.s32.totalorder %s56, %s70
      %p72 = scmp.eq.s32.totalorder %s25, 0
      %p73 = por %p71, %p72
      %s75 = sadd.s32 %s74, 1
      %p78 = scmp.eq.s32.totalorder %s19, 1
      %p79 = scmp.ne.s32.totalorder %s74, %s76
      %p80 = scmp.eq.s32.totalorder %s19, 0
      %p81 = por %p79, %p80
      %p82 = scmp.ne.s32.totalorder %s74, %s76
      %p83 = scmp.eq.s32.totalorder %s24, 1
      %p84 = por %p82, %p83
      %p85 = scmp.ne.s32.totalorder %s76, %s77
      %p86 = scmp.eq.s32.totalorder %s24, 0
      %p87 = por %p85, %p86
      %p88 = scmp.ne.s32.totalorder %s76, %s77
      %p89 = scmp.eq.s32.totalorder %s25, 1
      %p90 = por %p88, %p89
      %p92 = scmp.ne.s32.totalorder %s77, %s91
      %p93 = scmp.eq.s32.totalorder %s25, 0
      %p94 = por %p92, %p93
      %s96 = sadd.s32 %s95, 1
      %p99 = scmp.eq.s32.totalorder %s19, 1
      %p100 = scmp.ne.s32.totalorder %s95, %s97
      %p101 = scmp.eq.s32.totalorder %s19, 0
      %p102 = por %p100, %p101
      %p103 = scmp.ne.s32.totalorder %s95, %s97
      %p104 = scmp.eq.s32.totalorder %s24, 1
      %p105 = por %p103, %p104
      %p106 = scmp.ne.s32.totalorder %s97, %s98
      %p107 = scmp.eq.s32.totalorder %s24, 0
      %p108 = por %p106, %p107
      %p109 = scmp.ne.s32.totalorder %s97, %s98
      %p110 = scmp.eq.s32.totalorder %s25, 1
      %p111 = por %p109, %p110
      %p113 = scmp.ne.s32.totalorder %s98, %s112
      %p114 = scmp.eq.s32.totalorder %s25, 0
      %p115 = por %p113, %p114
      %s117 = sadd.s32 %s116, 1
      %p120 = scmp.eq.s32.totalorder %s19, 1
      %p121 = scmp.ne.s32.totalorder %s116, %s118
      %p122 = scmp.eq.s32.totalorder %s19, 0
      %p123 = por %p121, %p122
      %p124 = scmp.ne.s32.totalorder %s116, %s118
      %p125 = scmp.eq.s32.totalorder %s24, 1
      %p126 = por %p124, %p125
      %p127 = scmp.ne.s32.totalorder %s118, %s119
      %p128 = scmp.eq.s32.totalorder %s24, 0
      %p129 = por %p127, %p128
      %p130 = scmp.ne.s32.totalorder %s118, %s119
      %p131 = scmp.eq.s32.totalorder %s25, 1
      %p132 = por %p130, %p131
      %p134 = scmp.ne.s32.totalorder %s119, %s133
      %p135 = scmp.eq.s32.totalorder %s25, 0
      %p136 = por %p134, %p135
      %s137 = ssub.s32 %s19, %s26
      %p138 = scmp.eq.s32.totalorder %s137, 0
      %s140 = sadd.s32 %s139, 1
      %s141 = scalar_select %p138, %s139, %s140
      %p144 = pneg %p138
      %p145 = scmp.eq.s32.totalorder %s19, 1
      %p146 = por %p144, %p145
      %p147 = scmp.ne.s32.totalorder %s139, %s142
      %p148 = scmp.eq.s32.totalorder %s19, 0
      %p149 = por %p147, %p148
      %p150 = scmp.ne.s32.totalorder %s139, %s142
      %p151 = scmp.eq.s32.totalorder %s24, 1
      %p152 = por %p150, %p151
      %p153 = scmp.ne.s32.totalorder %s142, %s143
      %p154 = scmp.eq.s32.totalorder %s24, 0
      %p155 = por %p153, %p154
      %p156 = scmp.ne.s32.totalorder %s142, %s143
      %p157 = scmp.eq.s32.totalorder %s25, 1
      %p158 = por %p156, %p157
      %p160 = scmp.ne.s32.totalorder %s143, %s159
      %p161 = scmp.eq.s32.totalorder %s25, 0
      %p162 = por %p160, %p161
      %s163 = ssub.s32 %s19, %s26
      %p164 = scmp.eq.s32.totalorder %s163, 0
      %s166 = sadd.s32 %s165, 1
      %s167 = scalar_select %p164, %s165, %s166
      %p170 = pneg %p164
      %p171 = scmp.eq.s32.totalorder %s19, 1
      %p172 = por %p170, %p171
      %p173 = scmp.ne.s32.totalorder %s165, %s168
      %p174 = scmp.eq.s32.totalorder %s19, 0
      %p175 = por %p173, %p174
      %p176 = scmp.ne.s32.totalorder %s165, %s168
      %p177 = scmp.eq.s32.totalorder %s24, 1
      %p178 = por %p176, %p177
      %p179 = scmp.ne.s32.totalorder %s168, %s169
      %p180 = scmp.eq.s32.totalorder %s24, 0
      %p181 = por %p179, %p180
      %p182 = scmp.ne.s32.totalorder %s168, %s169
      %p183 = scmp.eq.s32.totalorder %s25, 1
      %p184 = por %p182, %p183
      %p186 = scmp.ne.s32.totalorder %s169, %s185
      %p187 = scmp.eq.s32.totalorder %s25, 0
      %p188 = por %p186, %p187
      %p189 = scmp.le.s32.totalorder 1, %s19
      %p190 = scmp.lt.s32.totalorder %s19, 3
      %p191 = pnand %p189, %p190
      %p192 = pneg %p191
      // Predicated region
      $region9: #{tpu_custom_call.1} parent=5 // pred_check
        _
      $region10: #{tpu_custom_call.1} parent=5 // pred_check_branch
        %194 = sbr.rel (%p191) target = $region12
      $region11: #{tpu_custom_call.1} parent=5 // pred_region
        %s195 = ssub.s32 %s19, 1
        // Predicated region
        $region13: #{tpu_custom_call.1} parent=11 // pred_check
          %p196 = pneg %p66
        $region14: #{tpu_custom_call.1} parent=11 // pred_check_branch
          %198 = sbr.rel (%p196) target = $region16
        $region15: #{tpu_custom_call.1} parent=11 // pred_region
          _
        $region16: #{tpu_custom_call.1} parent=11 // pred_fallthru
          _
        // Predicated region
        $region17: #{tpu_custom_call.1} parent=11 // pred_check
          %p199 = pneg %p87
        $region18: #{tpu_custom_call.1} parent=11 // pred_check_branch
          %201 = sbr.rel (%p199) target = $region20
        $region19: #{tpu_custom_call.1} parent=11 // pred_region
          _
        $region20: #{tpu_custom_call.1} parent=11 // pred_fallthru
          _
        // Predicated region
        $region21: #{tpu_custom_call.1} parent=11 // pred_check
          %p202 = pneg %p108
        $region22: #{tpu_custom_call.1} parent=11 // pred_check_branch
          %204 = sbr.rel (%p202) target = $region24
        $region23: #{tpu_custom_call.1} parent=11 // pred_region
          _
        $region24: #{tpu_custom_call.1} parent=11 // pred_fallthru
          _
        // Predicated region
        $region25: #{tpu_custom_call.1} parent=11 // pred_check
          %p205 = pneg %p129
        $region26: #{tpu_custom_call.1} parent=11 // pred_check_branch
          %207 = sbr.rel (%p205) target = $region28
        $region27: #{tpu_custom_call.1} parent=11 // pred_region
          _
        $region28: #{tpu_custom_call.1} parent=11 // pred_fallthru
          _
      $region12: #{tpu_custom_call.1} parent=5 // pred_fallthru
        _
      %p208 = scmp.lt.s32.totalorder %s19, 2
      // Predicated region
      $region29: #{tpu_custom_call.1} parent=5 // pred_check
        %p209 = pneg %p208
      $region30: #{tpu_custom_call.1} parent=5 // pred_check_branch
        %211 = sbr.rel (%p209) target = $region32
      $region31: #{tpu_custom_call.1} parent=5 // pred_region
        // Predicated region
        $region33: #{tpu_custom_call.1} parent=31 // pred_check
          %p212 = pneg %p39
        $region34: #{tpu_custom_call.1} parent=31 // pred_check_branch
          %214 = sbr.rel (%p212) target = $region36
        $region35: #{tpu_custom_call.1} parent=31 // pred_region
          %s215 = sand.u32 %s29, 1
          %s216 = sand.u32 %s29, 1
          %s217 = smul.addr %s216, 16
          %s218 = scalar_lea.vmem [#allocation2], %s217
          %s219 = smul.addr %s19, 8
          %s220 = scalar_lea.vmem %s0, %s219
          // Predicated region
          $region37: #{tpu_custom_call.1} parent=35 // pred_check
            _
          $region38: #{tpu_custom_call.1} parent=35 // pred_check_branch
            %222 = sbr.rel (0) target = $region40
          $region39: #{tpu_custom_call.1} parent=35 // pred_region
            // Predicated region
            $region41: #{tpu_custom_call.1} parent=39 // pred_check
              _
            $region42: #{tpu_custom_call.1} parent=39 // pred_check_branch
              %224 = sbr.rel (0) target = $region44
            $region43: #{tpu_custom_call.1} parent=39 // pred_region
              // Predicated region
              $region56: #{tpu_custom_call.1} parent=43 // pred_check
                _
              $region57: #{tpu_custom_call.1} parent=43 // pred_check_branch
                %241 = sbr.rel (0) target = $region59
              $region58: #{tpu_custom_call.1} parent=43 // pred_region
                loop: start=0, step=1, limit=1
                $region60: #{tpu_custom_call.1} parent=58 // loop_pre_header
                  _
                $region61: #{tpu_custom_call.1} parent=58 // loop_header
                  %s243 = sphi 0, %s247
                  %p244 = scmp.ge.s32.totalorder %s243, 1
                  %s248 = sphi %s220, %s220
                  %s249 = sphi %s218, %s218
                $region62: #{tpu_custom_call.1} parent=58 // loop_header_branch
                  %246 = sbr.rel (%p244) target = $region66
                $region63: #{tpu_custom_call.1} parent=58 // loop_body
                  %v250 = vld [vmem:[%s248] sm:$0xff]
                  %251 = vst [vmem:[%s249] sm:$0xff] %v250
                  %v252 = vld [vmem:[%s248 + $0x10] sm:$0xff]
                  %253 = vst [vmem:[%s249 + $0x8] sm:$0xff] %v252
                $region64: #{tpu_custom_call.1} parent=58 // loop_footer
                  %s247 = sadd.s32 1, %s243
                $region65: #{tpu_custom_call.1} parent=58 // loop_footer_branch
                  %242 = sbr.rel target = $region61
                $region66: #{tpu_custom_call.1} parent=58 // loop_exit
                  _
              $region59: #{tpu_custom_call.1} parent=43 // pred_fallthru
                _
              // Predicated region
              $region67: #{tpu_custom_call.1} parent=43 // pred_check
                _
              $region68: #{tpu_custom_call.1} parent=43 // pred_check_branch
                %255 = sbr.rel target = $region70
              $region69: #{tpu_custom_call.1} parent=43 // pred_region
                _
              $region70: #{tpu_custom_call.1} parent=43 // pred_fallthru
                _
            $region44: #{tpu_custom_call.1} parent=39 // pred_fallthru
              _
            // Predicated region
            $region45: #{tpu_custom_call.1} parent=39 // pred_check
              _
            $region46: #{tpu_custom_call.1} parent=39 // pred_check_branch
              %226 = sbr.rel target = $region48
            $region47: #{tpu_custom_call.1} parent=39 // pred_region
              loop: start=0, step=1, limit=1
              $region49: #{tpu_custom_call.1} parent=47 // loop_pre_header
                _
              $region50: #{tpu_custom_call.1} parent=47 // loop_header
                %s229 = sphi 0, %s233
                %p230 = scmp.ge.s32.totalorder %s229, 1
                %s234 = sphi %s220, %s220
                %s235 = sphi %s218, %s218
              $region51: #{tpu_custom_call.1} parent=47 // loop_header_branch
                %232 = sbr.rel (%p230) target = $region55
              $region52: #{tpu_custom_call.1} parent=47 // loop_body
                %v236 = vld [vmem:[%s234] sm:$0xff]
                %237 = vst [vmem:[%s235] sm:$0xff] %v236
                %v238 = vld [vmem:[%s234 + $0x10] sm:$0xff]
                %239 = vst [vmem:[%s235 + $0x8] sm:$0xff] %v238
              $region53: #{tpu_custom_call.1} parent=47 // loop_footer
                %s233 = sadd.s32 1, %s229
              $region54: #{tpu_custom_call.1} parent=47 // loop_footer_branch
                %228 = sbr.rel target = $region50
              $region55: #{tpu_custom_call.1} parent=47 // loop_exit
                _
            $region48: #{tpu_custom_call.1} parent=39 // pred_fallthru
              _
          $region40: #{tpu_custom_call.1} parent=35 // pred_fallthru
            _
          %256 = vnop
        $region36: #{tpu_custom_call.1} parent=31 // pred_fallthru
          _
      $region32: #{tpu_custom_call.1} parent=5 // pred_fallthru
        _
      %p257 = scmp.le.s32.totalorder 1, %s19
      %p258 = scmp.lt.s32.totalorder %s19, 3
      %p259 = pnand %p257, %p258
      %p260 = pneg %p259
      // Predicated region
      $region71: #{tpu_custom_call.1} parent=5 // pred_check
        _
      $region72: #{tpu_custom_call.1} parent=5 // pred_check_branch
        %262 = sbr.rel (%p259) target = $region74
      $region73: #{tpu_custom_call.1} parent=5 // pred_region
        %s263 = ssub.s32 %s19, 1
        %s264 = sand.u32 %s32, 1
        %s265 = sand.u32 %s32, 1
        %s266 = smul.addr %s265, 16
        %s267 = scalar_lea.vmem [#allocation2], %s266
        // Predicated region
        $region75: #{tpu_custom_call.1} parent=73 // pred_check
          %p268 = pneg %p45
        $region76: #{tpu_custom_call.1} parent=73 // pred_check_branch
          %270 = sbr.rel (%p268) target = $region78
        $region77: #{tpu_custom_call.1} parent=73 // pred_region
          _
        $region78: #{tpu_custom_call.1} parent=73 // pred_fallthru
          _
        %s271 = sand.u32 %s32, 1
        %s272 = sand.u32 %s32, 1
        %s273 = smul.addr %s272, 16
        %s274 = scalar_lea.vmem [#allocation2], %s273
        %p275 = pneg %p45
        %p276 = pneg %p42
        %p277 = pneg %p66
        %p278 = pneg %p63
        %p279 = pneg %p87
        %p280 = pneg %p84
        %p281 = pneg %p108
        %p282 = pneg %p105
        %p283 = pneg %p129
        %p284 = pneg %p126
        %p285 = pneg %p155
        %p286 = pneg %p152
        %s287 = sand.u32 %s142, 1
        %s288 = scalar_lea.sflag [#allocation4], %s287
        %s289 = sand.u32 %s142, 1
        %s290 = smul.addr %s289, 16
        %s291 = scalar_lea.vmem [#allocation3], %s290
        %p292 = pneg %p181
        %p293 = pneg %p178
        %s294 = sand.u32 %s168, 1
        %s295 = scalar_lea.sflag [#allocation6], %s294
        %s296 = sand.u32 %s168, 1
        %s297 = smul.addr %s296, 2
        %s298 = scalar_lea.vmem [#allocation5], %s297
        %v299 = vld [vmem:[%s267] sm:$0xff]
        %v300 = vld [vmem:[%s267 + $0x8] sm:$0xff]
        %v301 = vld [vmem:[%s1] sm:$0xff]
        %v302 = vld [vmem:[%s1 + $0x8] sm:$0xff]
        %v303 = vld [vmem:[%s1 + $0x10] sm:$0xff]
        %v304 = vld [vmem:[%s1 + $0x18] sm:$0xff]
        %v305 = vld [vmem:[%s2] sm:$0xff]
        %v306 = vld [vmem:[%s2 + $0x8] sm:$0xff]
        %v307 = vld [vmem:[%s2 + $0x10] sm:$0xff]
        %v308 = vld [vmem:[%s2 + $0x18] sm:$0xff]
        %310 = vset.pattern.permute.xlu0 0
        %311 = vperm.xlu0 %310, %v305
        %v312 = vpop.permute.xlu0 %311
        %315 = vset.pattern.permute.xlu0 0
        %316 = vperm.xlu0 %315, %v306
        %v317 = vpop.permute.xlu0 %316
        %320 = vset.pattern.permute.xlu0 0
        %321 = vperm.xlu0 %320, %v307
        %v322 = vpop.permute.xlu0 %321
        %325 = vset.pattern.permute.xlu0 0
        %326 = vperm.xlu0 %325, %v308
        %v327 = vpop.permute.xlu0 %326
        %vm329 = vcmask 64512
        %v331 = vsel %vm329, %v301, 0
        %v334 = vsel %vm329, %v302, 0
        %v337 = vsel %vm329, %v303, 0
        %v340 = vsel %vm329, %v304, 0
        %342 = vmatprep.subr.mxu0 0.0
        %343 = vmatpush1.msra.mxu0 %v299
        %344 = vmatprep.subr.mxu0 0.0
        %345 = vmatpush1.msra.mxu0 0.0
        %346 = vmatprep.subr.mxu0 0.0
        %347 = vmatpush1.msra.mxu0 0.0
        %348 = vmatprep.subr.mxu0 0.0
        %349 = vmatpush1.msra.mxu0 0.0
        %350 = vmatprep.subr.mxu0 0.0
        %351 = vmatpush1.msra.mxu0 0.0
        %352 = vmatprep.subr.mxu0 0.0
        %353 = vmatpush1.msra.mxu0 0.0
        %354 = vmatprep.subr.mxu0 0.0
        %355 = vmatpush1.msra.mxu0 0.0
        %356 = vmatprep.subr.mxu0 0.0
        %357 = vmatpush1.msra.mxu0 0.0
        %358 = vmatprep.subr.mxu0 0.0
        %359 = vmatpush1.msra.mxu0 0.0
        %360 = vmatprep.subr.mxu0 0.0
        %361 = vmatpush1.msra.mxu0 0.0
        %362 = vmatprep.subr.mxu0 0.0
        %363 = vmatpush1.msra.mxu0 0.0
        %364 = vmatprep.subr.mxu0 0.0
        %365 = vmatpush1.msra.mxu0 0.0
        %366 = vmatprep.subr.mxu0 0.0
        %367 = vmatpush1.msra.mxu0 0.0
        %368 = vmatprep.subr.mxu0 0.0
        %369 = vmatpush1.msra.mxu0 0.0
        %370 = vmatprep.subr.mxu0 0.0
        %371 = vmatpush1.msra.mxu0 0.0
        %372 = vmatprep.subr.mxu0 0.0
        %373 = vmatpush1.msra.mxu0 0.0
        %374 = vmatprep.subr.mxu0 0.0
        %375 = vmatpush1.msra.mxu0 0.0
        %376 = vmatprep.subr.mxu0 0.0
        %377 = vmatpush1.msra.mxu0 0.0
        %378 = vmatprep.subr.mxu0 0.0
        %379 = vmatpush1.msra.mxu0 0.0
        %380 = vmatprep.subr.mxu0 0.0
        %381 = vmatpush1.msra.mxu0 0.0
        %382 = vmatprep.subr.mxu0 0.0
        %383 = vmatpush1.msra.mxu0 0.0
        %384 = vmatprep.subr.mxu0 0.0
        %385 = vmatpush1.msra.mxu0 0.0
        %386 = vmatprep.subr.mxu0 0.0
        %387 = vmatpush1.msra.mxu0 0.0
        %388 = vmatprep.subr.mxu0 0.0
        %389 = vmatpush1.msra.mxu0 0.0
        %390 = vmatprep.subr.mxu0 0.0
        %391 = vmatpush1.msra.mxu0 0.0
        %392 = vmatprep.subr.mxu0 0.0
        %393 = vmatpush1.msra.mxu0 0.0
        %394 = vmatprep.subr.mxu0 0.0
        %395 = vmatpush1.msra.mxu0 0.0
        %396 = vmatprep.subr.mxu0 0.0
        %397 = vmatpush1.msra.mxu0 0.0
        %398 = vmatprep.subr.mxu0 0.0
        %399 = vmatpush1.msra.mxu0 0.0
        %400 = vmatprep.subr.mxu0 0.0
        %401 = vmatpush1.msra.mxu0 0.0
        %402 = vmatprep.subr.mxu0 0.0
        %403 = vmatpush1.msra.mxu0 0.0
        %404 = vmatprep.subr.mxu0 0.0
        %405 = vmatpush1.msra.mxu0 0.0
        %406 = vmatprep.mubr.f32.mxu0 0.0
        %407 = vmatmul.mubr.f32.gmra.mrb[0].mxu0 %v331
        %v408 = vpop.f32.mrb[0].mxu0
        %v409 = vadd.f32 %v312, %v408
        %v410 = vpop.f32.mrb[0].mxu0
        %411 = vmatprep.mubr.f32.mxu0 0.0
        %412 = vmatmul.mubr.f32.gmra.mrb[0].mxu0 %v334
        %v413 = vpop.f32.mrb[0].mxu0
        %v414 = vadd.f32 %v317, %v413
        %v415 = vpop.f32.mrb[0].mxu0
        %416 = vmatprep.mubr.f32.mxu0 0.0
        %417 = vmatmul.mubr.f32.gmra.mrb[0].mxu0 %v337
        %v418 = vpop.f32.mrb[0].mxu0
        %v419 = vadd.f32 %v322, %v418
        %v420 = vpop.f32.mrb[0].mxu0
        %421 = vmatprep.mubr.f32.mxu0 0.0
        %422 = vmatmul.mubr.f32.gmra.mrb[0].mxu0 %v340
        %v423 = vpop.f32.mrb[0].mxu0
        %v424 = vadd.f32 %v327, %v423
        %v425 = vpop.f32.mrb[0].mxu0
        %426 = vdwg.mxu0
        %v427 = vtanh.pop %v409
        %v428 = vtanh.pop %v414
        %v429 = vtanh.pop %v419
        %v430 = vtanh.pop %v424
        %v431 = vld [vmem:[%s3] sm:$0xff]
        %v432 = vld [vmem:[%s3 + $0x8] sm:$0xff]
        %v433 = vld [vmem:[%s4] sm:$0xff]
        %v434 = vld [vmem:[%s4 + $0x8] sm:$0xff]
        %436 = vset.pattern.permute.xlu0 0
        %437 = vperm.xlu0 %436, %v433
        %v438 = vpop.permute.xlu0 %437
        %441 = vset.pattern.permute.xlu0 0
        %442 = vperm.xlu0 %441, %v434
        %v443 = vpop.permute.xlu0 %442
        %vm445 = vcmask 261120
        %v447 = vsel %vm445, %v431, 0
        %v450 = vsel %vm445, %v432, 0
        %452 = vmatprep.subr.mxu0 0.0
        %453 = vmatpush1.msra.mxu0 %v427
        %454 = vmatprep.subr.mxu0 0.0
        %455 = vmatpush1.msra.mxu0 %v428
        %456 = vmatprep.subr.mxu0 0.0
        %457 = vmatpush1.msra.mxu0 %v429
        %458 = vmatprep.subr.mxu0 0.0
        %459 = vmatpush1.msra.mxu0 %v430
        %460 = vmatprep.subr.mxu0 0.0
        %461 = vmatpush1.msra.mxu0 0.0
        %462 = vmatprep.subr.mxu0 0.0
        %463 = vmatpush1.msra.mxu0 0.0
        %464 = vmatprep.subr.mxu0 0.0
        %465 = vmatpush1.msra.mxu0 0.0
        %466 = vmatprep.subr.mxu0 0.0
        %467 = vmatpush1.msra.mxu0 0.0
        %468 = vmatprep.subr.mxu0 0.0
        %469 = vmatpush1.msra.mxu0 0.0
        %470 = vmatprep.subr.mxu0 0.0
        %471 = vmatpush1.msra.mxu0 0.0
        %472 = vmatprep.subr.mxu0 0.0
        %473 = vmatpush1.msra.mxu0 0.0
        %474 = vmatprep.subr.mxu0 0.0
        %475 = vmatpush1.msra.mxu0 0.0
        %476 = vmatprep.subr.mxu0 0.0
        %477 = vmatpush1.msra.mxu0 0.0
        %478 = vmatprep.subr.mxu0 0.0
        %479 = vmatpush1.msra.mxu0 0.0
        %480 = vmatprep.subr.mxu0 0.0
        %481 = vmatpush1.msra.mxu0 0.0
        %482 = vmatprep.subr.mxu0 0.0
        %483 = vmatpush1.msra.mxu0 0.0
        %484 = vmatprep.subr.mxu0 0.0
        %485 = vmatpush1.msra.mxu0 0.0
        %486 = vmatprep.subr.mxu0 0.0
        %487 = vmatpush1.msra.mxu0 0.0
        %488 = vmatprep.subr.mxu0 0.0
        %489 = vmatpush1.msra.mxu0 0.0
        %490 = vmatprep.subr.mxu0 0.0
        %491 = vmatpush1.msra.mxu0 0.0
        %492 = vmatprep.subr.mxu0 0.0
        %493 = vmatpush1.msra.mxu0 0.0
        %494 = vmatprep.subr.mxu0 0.0
        %495 = vmatpush1.msra.mxu0 0.0
        %496 = vmatprep.subr.mxu0 0.0
        %497 = vmatpush1.msra.mxu0 0.0
        %498 = vmatprep.subr.mxu0 0.0
        %499 = vmatpush1.msra.mxu0 0.0
        %500 = vmatprep.subr.mxu0 0.0
        %501 = vmatpush1.msra.mxu0 0.0
        %502 = vmatprep.subr.mxu0 0.0
        %503 = vmatpush1.msra.mxu0 0.0
        %504 = vmatprep.subr.mxu0 0.0
        %505 = vmatpush1.msra.mxu0 0.0
        %506 = vmatprep.subr.mxu0 0.0
        %507 = vmatpush1.msra.mxu0 0.0
        %508 = vmatprep.subr.mxu0 0.0
        %509 = vmatpush1.msra.mxu0 0.0
        %510 = vmatprep.subr.mxu0 0.0
        %511 = vmatpush1.msra.mxu0 0.0
        %512 = vmatprep.subr.mxu0 0.0
        %513 = vmatpush1.msra.mxu0 0.0
        %514 = vmatprep.subr.mxu0 0.0
        %515 = vmatpush1.msra.mxu0 0.0
        %516 = vmatprep.mubr.f32.mxu0 0.0
        %517 = vmatmul.mubr.f32.gmra.mrb[0].mxu0 %v447
        %v518 = vpop.f32.mrb[0].mxu0
        %v519 = vadd.f32 %v438, %v518
        %v520 = vpop.f32.mrb[0].mxu0
        %521 = vmatprep.mubr.f32.mxu0 0.0
        %522 = vmatmul.mubr.f32.gmra.mrb[0].mxu0 %v450
        %v523 = vpop.f32.mrb[0].mxu0
        %v524 = vadd.f32 %v443, %v523
        %v525 = vpop.f32.mrb[0].mxu0
        %526 = vdwg.mxu0
        %v527 = vtanh.pop %v519
        %v528 = vmul.f32 %v527, 1.442695
        %v529 = vpow.pop %v528
        %v530 = vmul.f32 %v300, %v529
        %v531 = vadd.f32 %v530, %v524
        %v532 = vadd.f32 %v527, 0.0
        %s533 = scalar_lea.vmem %s1, 32
        %v534 = vld [vmem:[%s533] sm:$0xff]
        %v535 = vld [vmem:[%s533 + $0x8] sm:$0xff]
        %v536 = vld [vmem:[%s533 + $0x10] sm:$0xff]
        %v537 = vld [vmem:[%s533 + $0x18] sm:$0xff]
        %s538 = scalar_lea.vmem %s2, 32
        %v539 = vld [vmem:[%s538] sm:$0xff]
        %v540 = vld [vmem:[%s538 + $0x8] sm:$0xff]
        %v541 = vld [vmem:[%s538 + $0x10] sm:$0xff]
        %v542 = vld [vmem:[%s538 + $0x18] sm:$0xff]
        %544 = vset.pattern.permute.xlu0 0
        %545 = vperm.xlu0 %544, %v539
        %v546 = vpop.permute.xlu0 %545
        %549 = vset.pattern.permute.xlu0 0
        %550 = vperm.xlu0 %549, %v540
        %v551 = vpop.permute.xlu0 %550
        %554 = vset.pattern.permute.xlu0 0
        %555 = vperm.xlu0 %554, %v541
        %v556 = vpop.permute.xlu0 %555
        %559 = vset.pattern.permute.xlu0 0
        %560 = vperm.xlu0 %559, %v542
        %v561 = vpop.permute.xlu0 %560
        %v564 = vsel %vm329, %v534, 0
        %v567 = vsel %vm329, %v535, 0
        %v570 = vsel %vm329, %v536, 0
        %v573 = vsel %vm329, %v537, 0
        %575 = vmatprep.subr.mxu0 0.0
        %576 = vmatpush1.msra.mxu0 %v531
        %577 = vmatprep.subr.mxu0 0.0
        %578 = vmatpush1.msra.mxu0 0.0
        %579 = vmatprep.subr.mxu0 0.0
        %580 = vmatpush1.msra.mxu0 0.0
        %581 = vmatprep.subr.mxu0 0.0
        %582 = vmatpush1.msra.mxu0 0.0
        %583 = vmatprep.subr.mxu0 0.0
        %584 = vmatpush1.msra.mxu0 0.0
        %585 = vmatprep.subr.mxu0 0.0
        %586 = vmatpush1.msra.mxu0 0.0
        %587 = vmatprep.subr.mxu0 0.0
        %588 = vmatpush1.msra.mxu0 0.0
        %589 = vmatprep.subr.mxu0 0.0
        %590 = vmatpush1.msra.mxu0 0.0
        %591 = vmatprep.subr.mxu0 0.0
        %592 = vmatpush1.msra.mxu0 0.0
        %593 = vmatprep.subr.mxu0 0.0
        %594 = vmatpush1.msra.mxu0 0.0
        %595 = vmatprep.subr.mxu0 0.0
        %596 = vmatpush1.msra.mxu0 0.0
        %597 = vmatprep.subr.mxu0 0.0
        %598 = vmatpush1.msra.mxu0 0.0
        %599 = vmatprep.subr.mxu0 0.0
        %600 = vmatpush1.msra.mxu0 0.0
        %601 = vmatprep.subr.mxu0 0.0
        %602 = vmatpush1.msra.mxu0 0.0
        %603 = vmatprep.subr.mxu0 0.0
        %604 = vmatpush1.msra.mxu0 0.0
        %605 = vmatprep.subr.mxu0 0.0
        %606 = vmatpush1.msra.mxu0 0.0
        %607 = vmatprep.subr.mxu0 0.0
        %608 = vmatpush1.msra.mxu0 0.0
        %609 = vmatprep.subr.mxu0 0.0
        %610 = vmatpush1.msra.mxu0 0.0
        %611 = vmatprep.subr.mxu0 0.0
        %612 = vmatpush1.msra.mxu0 0.0
        %613 = vmatprep.subr.mxu0 0.0
        %614 = vmatpush1.msra.mxu0 0.0
        %615 = vmatprep.subr.mxu0 0.0
        %616 = vmatpush1.msra.mxu0 0.0
        %617 = vmatprep.subr.mxu0 0.0
        %618 = vmatpush1.msra.mxu0 0.0
        %619 = vmatprep.subr.mxu0 0.0
        %620 = vmatpush1.msra.mxu0 0.0
        %621 = vmatprep.subr.mxu0 0.0
        %622 = vmatpush1.msra.mxu0 0.0
        %623 = vmatprep.subr.mxu0 0.0
        %624 = vmatpush1.msra.mxu0 0.0
        %625 = vmatprep.subr.mxu0 0.0
        %626 = vmatpush1.msra.mxu0 0.0
        %627 = vmatprep.subr.mxu0 0.0
        %628 = vmatpush1.msra.mxu0 0.0
        %629 = vmatprep.subr.mxu0 0.0
        %630 = vmatpush1.msra.mxu0 0.0
        %631 = vmatprep.subr.mxu0 0.0
        %632 = vmatpush1.msra.mxu0 0.0
        %633 = vmatprep.subr.mxu0 0.0
        %634 = vmatpush1.msra.mxu0 0.0
        %635 = vmatprep.subr.mxu0 0.0
        %636 = vmatpush1.msra.mxu0 0.0
        %637 = vmatprep.subr.mxu0 0.0
        %638 = vmatpush1.msra.mxu0 0.0
        %639 = vmatprep.mubr.f32.mxu0 0.0
        %640 = vmatmul.mubr.f32.gmra.mrb[0].mxu0 %v564
        %v641 = vpop.f32.mrb[0].mxu0
        %v642 = vadd.f32 %v546, %v641
        %v643 = vpop.f32.mrb[0].mxu0
        %644 = vmatprep.mubr.f32.mxu0 0.0
        %645 = vmatmul.mubr.f32.gmra.mrb[0].mxu0 %v567
        %v646 = vpop.f32.mrb[0].mxu0
        %v647 = vadd.f32 %v551, %v646
        %v648 = vpop.f32.mrb[0].mxu0
        %649 = vmatprep.mubr.f32.mxu0 0.0
        %650 = vmatmul.mubr.f32.gmra.mrb[0].mxu0 %v570
        %v651 = vpop.f32.mrb[0].mxu0
        %v652 = vadd.f32 %v556, %v651
        %v653 = vpop.f32.mrb[0].mxu0
        %654 = vmatprep.mubr.f32.mxu0 0.0
        %655 = vmatmul.mubr.f32.gmra.mrb[0].mxu0 %v573
        %v656 = vpop.f32.mrb[0].mxu0
        %v657 = vadd.f32 %v561, %v656
        %v658 = vpop.f32.mrb[0].mxu0
        %659 = vdwg.mxu0
        %v660 = vtanh.pop %v642
        %v661 = vtanh.pop %v647
        %v662 = vtanh.pop %v652
        %v663 = vtanh.pop %v657
        %s664 = scalar_lea.vmem %s3, 16
        %v665 = vld [vmem:[%s664] sm:$0xff]
        %v666 = vld [vmem:[%s664 + $0x8] sm:$0xff]
        %s667 = scalar_lea.vmem %s4, 16
        %v668 = vld [vmem:[%s667] sm:$0xff]
        %v669 = vld [vmem:[%s667 + $0x8] sm:$0xff]
        %671 = vset.pattern.permute.xlu0 0
        %672 = vperm.xlu0 %671, %v668
        %v673 = vpop.permute.xlu0 %672
        %676 = vset.pattern.permute.xlu0 0
        %677 = vperm.xlu0 %676, %v669
        %v678 = vpop.permute.xlu0 %677
        %v681 = vsel %vm445, %v665, 0
        %v684 = vsel %vm445, %v666, 0
        %686 = vmatprep.subr.mxu0 0.0
        %687 = vmatpush1.msra.mxu0 %v660
        %688 = vmatprep.subr.mxu0 0.0
        %689 = vmatpush1.msra.mxu0 %v661
        %690 = vmatprep.subr.mxu0 0.0
        %691 = vmatpush1.msra.mxu0 %v662
        %692 = vmatprep.subr.mxu0 0.0
        %693 = vmatpush1.msra.mxu0 %v663
        %694 = vmatprep.subr.mxu0 0.0
        %695 = vmatpush1.msra.mxu0 0.0
        %696 = vmatprep.subr.mxu0 0.0
        %697 = vmatpush1.msra.mxu0 0.0
        %698 = vmatprep.subr.mxu0 0.0
        %699 = vmatpush1.msra.mxu0 0.0
        %700 = vmatprep.subr.mxu0 0.0
        %701 = vmatpush1.msra.mxu0 0.0
        %702 = vmatprep.subr.mxu0 0.0
        %703 = vmatpush1.msra.mxu0 0.0
        %704 = vmatprep.subr.mxu0 0.0
        %705 = vmatpush1.msra.mxu0 0.0
        %706 = vmatprep.subr.mxu0 0.0
        %707 = vmatpush1.msra.mxu0 0.0
        %708 = vmatprep.subr.mxu0 0.0
        %709 = vmatpush1.msra.mxu0 0.0
        %710 = vmatprep.subr.mxu0 0.0
        %711 = vmatpush1.msra.mxu0 0.0
        %712 = vmatprep.subr.mxu0 0.0
        %713 = vmatpush1.msra.mxu0 0.0
        %714 = vmatprep.subr.mxu0 0.0
        %715 = vmatpush1.msra.mxu0 0.0
        %716 = vmatprep.subr.mxu0 0.0
        %717 = vmatpush1.msra.mxu0 0.0
        %718 = vmatprep.subr.mxu0 0.0
        %719 = vmatpush1.msra.mxu0 0.0
        %720 = vmatprep.subr.mxu0 0.0
        %721 = vmatpush1.msra.mxu0 0.0
        %722 = vmatprep.subr.mxu0 0.0
        %723 = vmatpush1.msra.mxu0 0.0
        %724 = vmatprep.subr.mxu0 0.0
        %725 = vmatpush1.msra.mxu0 0.0
        %726 = vmatprep.subr.mxu0 0.0
        %727 = vmatpush1.msra.mxu0 0.0
        %728 = vmatprep.subr.mxu0 0.0
        %729 = vmatpush1.msra.mxu0 0.0
        %730 = vmatprep.subr.mxu0 0.0
        %731 = vmatpush1.msra.mxu0 0.0
        %732 = vmatprep.subr.mxu0 0.0
        %733 = vmatpush1.msra.mxu0 0.0
        %734 = vmatprep.subr.mxu0 0.0
        %735 = vmatpush1.msra.mxu0 0.0
        %736 = vmatprep.subr.mxu0 0.0
        %737 = vmatpush1.msra.mxu0 0.0
        %738 = vmatprep.subr.mxu0 0.0
        %739 = vmatpush1.msra.mxu0 0.0
        %740 = vmatprep.subr.mxu0 0.0
        %741 = vmatpush1.msra.mxu0 0.0
        %742 = vmatprep.subr.mxu0 0.0
        %743 = vmatpush1.msra.mxu0 0.0
        %744 = vmatprep.subr.mxu0 0.0
        %745 = vmatpush1.msra.mxu0 0.0
        %746 = vmatprep.subr.mxu0 0.0
        %747 = vmatpush1.msra.mxu0 0.0
        %748 = vmatprep.subr.mxu0 0.0
        %749 = vmatpush1.msra.mxu0 0.0
        %750 = vmatprep.mubr.f32.mxu0 0.0
        %751 = vmatmul.mubr.f32.gmra.mrb[0].mxu0 %v681
        %v752 = vpop.f32.mrb[0].mxu0
        %v753 = vadd.f32 %v673, %v752
        %v754 = vpop.f32.mrb[0].mxu0
        %755 = vmatprep.mubr.f32.mxu0 0.0
        %756 = vmatmul.mubr.f32.gmra.mrb[0].mxu0 %v684
        %v757 = vpop.f32.mrb[0].mxu0
        %v758 = vadd.f32 %v678, %v757
        %v759 = vpop.f32.mrb[0].mxu0
        %760 = vdwg.mxu0
        %v761 = vtanh.pop %v753
        %v762 = vmul.f32 %v761, 1.442695
        %v763 = vpow.pop %v762
        %v764 = vmul.f32 %v299, %v763
        %v765 = vadd.f32 %v764, %v758
        %v766 = vadd.f32 %v532, %v761
        %s767 = scalar_lea.vmem %s1, 64
        %v768 = vld [vmem:[%s767] sm:$0xff]
        %v769 = vld [vmem:[%s767 + $0x8] sm:$0xff]
        %v770 = vld [vmem:[%s767 + $0x10] sm:$0xff]
        %v771 = vld [vmem:[%s767 + $0x18] sm:$0xff]
        %s772 = scalar_lea.vmem %s2, 64
        %v773 = vld [vmem:[%s772] sm:$0xff]
        %v774 = vld [vmem:[%s772 + $0x8] sm:$0xff]
        %v775 = vld [vmem:[%s772 + $0x10] sm:$0xff]
        %v776 = vld [vmem:[%s772 + $0x18] sm:$0xff]
        %778 = vset.pattern.permute.xlu0 0
        %779 = vperm.xlu0 %778, %v773
        %v780 = vpop.permute.xlu0 %779
        %783 = vset.pattern.permute.xlu0 0
        %784 = vperm.xlu0 %783, %v774
        %v785 = vpop.permute.xlu0 %784
        %788 = vset.pattern.permute.xlu0 0
        %789 = vperm.xlu0 %788, %v775
        %v790 = vpop.permute.xlu0 %789
        %793 = vset.pattern.permute.xlu0 0
        %794 = vperm.xlu0 %793, %v776
        %v795 = vpop.permute.xlu0 %794
        %v798 = vsel %vm329, %v768, 0
        %v801 = vsel %vm329, %v769, 0
        %v804 = vsel %vm329, %v770, 0
        %v807 = vsel %vm329, %v771, 0
        %809 = vmatprep.subr.mxu0 0.0
        %810 = vmatpush1.msra.mxu0 %v765
        %811 = vmatprep.subr.mxu0 0.0
        %812 = vmatpush1.msra.mxu0 0.0
        %813 = vmatprep.subr.mxu0 0.0
        %814 = vmatpush1.msra.mxu0 0.0
        %815 = vmatprep.subr.mxu0 0.0
        %816 = vmatpush1.msra.mxu0 0.0
        %817 = vmatprep.subr.mxu0 0.0
        %818 = vmatpush1.msra.mxu0 0.0
        %819 = vmatprep.subr.mxu0 0.0
        %820 = vmatpush1.msra.mxu0 0.0
        %821 = vmatprep.subr.mxu0 0.0
        %822 = vmatpush1.msra.mxu0 0.0
        %823 = vmatprep.subr.mxu0 0.0
        %824 = vmatpush1.msra.mxu0 0.0
        %825 = vmatprep.subr.mxu0 0.0
        %826 = vmatpush1.msra.mxu0 0.0
        %827 = vmatprep.subr.mxu0 0.0
        %828 = vmatpush1.msra.mxu0 0.0
        %829 = vmatprep.subr.mxu0 0.0
        %830 = vmatpush1.msra.mxu0 0.0
        %831 = vmatprep.subr.mxu0 0.0
        %832 = vmatpush1.msra.mxu0 0.0
        %833 = vmatprep.subr.mxu0 0.0
        %834 = vmatpush1.msra.mxu0 0.0
        %835 = vmatprep.subr.mxu0 0.0
        %836 = vmatpush1.msra.mxu0 0.0
        %837 = vmatprep.subr.mxu0 0.0
        %838 = vmatpush1.msra.mxu0 0.0
        %839 = vmatprep.subr.mxu0 0.0
        %840 = vmatpush1.msra.mxu0 0.0
        %841 = vmatprep.subr.mxu0 0.0
        %842 = vmatpush1.msra.mxu0 0.0
        %843 = vmatprep.subr.mxu0 0.0
        %844 = vmatpush1.msra.mxu0 0.0
        %845 = vmatprep.subr.mxu0 0.0
        %846 = vmatpush1.msra.mxu0 0.0
        %847 = vmatprep.subr.mxu0 0.0
        %848 = vmatpush1.msra.mxu0 0.0
        %849 = vmatprep.subr.mxu0 0.0
        %850 = vmatpush1.msra.mxu0 0.0
        %851 = vmatprep.subr.mxu0 0.0
        %852 = vmatpush1.msra.mxu0 0.0
        %853 = vmatprep.subr.mxu0 0.0
        %854 = vmatpush1.msra.mxu0 0.0
        %855 = vmatprep.subr.mxu0 0.0
        %856 = vmatpush1.msra.mxu0 0.0
        %857 = vmatprep.subr.mxu0 0.0
        %858 = vmatpush1.msra.mxu0 0.0
        %859 = vmatprep.subr.mxu0 0.0
        %860 = vmatpush1.msra.mxu0 0.0
        %861 = vmatprep.subr.mxu0 0.0
        %862 = vmatpush1.msra.mxu0 0.0
        %863 = vmatprep.subr.mxu0 0.0
        %864 = vmatpush1.msra.mxu0 0.0
        %865 = vmatprep.subr.mxu0 0.0
        %866 = vmatpush1.msra.mxu0 0.0
        %867 = vmatprep.subr.mxu0 0.0
        %868 = vmatpush1.msra.mxu0 0.0
        %869 = vmatprep.subr.mxu0 0.0
        %870 = vmatpush1.msra.mxu0 0.0
        %871 = vmatprep.subr.mxu0 0.0
        %872 = vmatpush1.msra.mxu0 0.0
        %873 = vmatprep.mubr.f32.mxu0 0.0
        %874 = vmatmul.mubr.f32.gmra.mrb[0].mxu0 %v798
        %v875 = vpop.f32.mrb[0].mxu0
        %v876 = vadd.f32 %v780, %v875
        %v877 = vpop.f32.mrb[0].mxu0
        %878 = vmatprep.mubr.f32.mxu0 0.0
        %879 = vmatmul.mubr.f32.gmra.mrb[0].mxu0 %v801
        %v880 = vpop.f32.mrb[0].mxu0
        %v881 = vadd.f32 %v785, %v880
        %v882 = vpop.f32.mrb[0].mxu0
        %883 = vmatprep.mubr.f32.mxu0 0.0
        %884 = vmatmul.mubr.f32.gmra.mrb[0].mxu0 %v804
        %v885 = vpop.f32.mrb[0].mxu0
        %v886 = vadd.f32 %v790, %v885
        %v887 = vpop.f32.mrb[0].mxu0
        %888 = vmatprep.mubr.f32.mxu0 0.0
        %889 = vmatmul.mubr.f32.gmra.mrb[0].mxu0 %v807
        %v890 = vpop.f32.mrb[0].mxu0
        %v891 = vadd.f32 %v795, %v890
        %v892 = vpop.f32.mrb[0].mxu0
        %893 = vdwg.mxu0
        %v894 = vtanh.pop %v876
        %v895 = vtanh.pop %v881
        %v896 = vtanh.pop %v886
        %v897 = vtanh.pop %v891
        %s898 = scalar_lea.vmem %s3, 32
        %v899 = vld [vmem:[%s898] sm:$0xff]
        %v900 = vld [vmem:[%s898 + $0x8] sm:$0xff]
        %s901 = scalar_lea.vmem %s4, 32
        %v902 = vld [vmem:[%s901] sm:$0xff]
        %v903 = vld [vmem:[%s901 + $0x8] sm:$0xff]
        %905 = vset.pattern.permute.xlu0 0
        %906 = vperm.xlu0 %905, %v902
        %v907 = vpop.permute.xlu0 %906
        %910 = vset.pattern.permute.xlu0 0
        %911 = vperm.xlu0 %910, %v903
        %v912 = vpop.permute.xlu0 %911
        %v915 = vsel %vm445, %v899, 0
        %v918 = vsel %vm445, %v900, 0
        %920 = vmatprep.subr.mxu0 0.0
        %921 = vmatpush1.msra.mxu0 %v894
        %922 = vmatprep.subr.mxu0 0.0
        %923 = vmatpush1.msra.mxu0 %v895
        %924 = vmatprep.subr.mxu0 0.0
        %925 = vmatpush1.msra.mxu0 %v896
        %926 = vmatprep.subr.mxu0 0.0
        %927 = vmatpush1.msra.mxu0 %v897
        %928 = vmatprep.subr.mxu0 0.0
        %929 = vmatpush1.msra.mxu0 0.0
        %930 = vmatprep.subr.mxu0 0.0
        %931 = vmatpush1.msra.mxu0 0.0
        %932 = vmatprep.subr.mxu0 0.0
        %933 = vmatpush1.msra.mxu0 0.0
        %934 = vmatprep.subr.mxu0 0.0
        %935 = vmatpush1.msra.mxu0 0.0
        %936 = vmatprep.subr.mxu0 0.0
        %937 = vmatpush1.msra.mxu0 0.0
        %938 = vmatprep.subr.mxu0 0.0
        %939 = vmatpush1.msra.mxu0 0.0
        %940 = vmatprep.subr.mxu0 0.0
        %941 = vmatpush1.msra.mxu0 0.0
        %942 = vmatprep.subr.mxu0 0.0
        %943 = vmatpush1.msra.mxu0 0.0
        %944 = vmatprep.subr.mxu0 0.0
        %945 = vmatpush1.msra.mxu0 0.0
        %946 = vmatprep.subr.mxu0 0.0
        %947 = vmatpush1.msra.mxu0 0.0
        %948 = vmatprep.subr.mxu0 0.0
        %949 = vmatpush1.msra.mxu0 0.0
        %950 = vmatprep.subr.mxu0 0.0
        %951 = vmatpush1.msra.mxu0 0.0
        %952 = vmatprep.subr.mxu0 0.0
        %953 = vmatpush1.msra.mxu0 0.0
        %954 = vmatprep.subr.mxu0 0.0
        %955 = vmatpush1.msra.mxu0 0.0
        %956 = vmatprep.subr.mxu0 0.0
        %957 = vmatpush1.msra.mxu0 0.0
        %958 = vmatprep.subr.mxu0 0.0
        %959 = vmatpush1.msra.mxu0 0.0
        %960 = vmatprep.subr.mxu0 0.0
        %961 = vmatpush1.msra.mxu0 0.0
        %962 = vmatprep.subr.mxu0 0.0
        %963 = vmatpush1.msra.mxu0 0.0
        %964 = vmatprep.subr.mxu0 0.0
        %965 = vmatpush1.msra.mxu0 0.0
        %966 = vmatprep.subr.mxu0 0.0
        %967 = vmatpush1.msra.mxu0 0.0
        %968 = vmatprep.subr.mxu0 0.0
        %969 = vmatpush1.msra.mxu0 0.0
        %970 = vmatprep.subr.mxu0 0.0
        %971 = vmatpush1.msra.mxu0 0.0
        %972 = vmatprep.subr.mxu0 0.0
        %973 = vmatpush1.msra.mxu0 0.0
        %974 = vmatprep.subr.mxu0 0.0
        %975 = vmatpush1.msra.mxu0 0.0
        %976 = vmatprep.subr.mxu0 0.0
        %977 = vmatpush1.msra.mxu0 0.0
        %978 = vmatprep.subr.mxu0 0.0
        %979 = vmatpush1.msra.mxu0 0.0
        %980 = vmatprep.subr.mxu0 0.0
        %981 = vmatpush1.msra.mxu0 0.0
        %982 = vmatprep.subr.mxu0 0.0
        %983 = vmatpush1.msra.mxu0 0.0
        %984 = vmatprep.mubr.f32.mxu0 0.0
        %985 = vmatmul.mubr.f32.gmra.mrb[0].mxu0 %v915
        %v986 = vpop.f32.mrb[0].mxu0
        %v987 = vadd.f32 %v907, %v986
        %v988 = vpop.f32.mrb[0].mxu0
        %989 = vmatprep.mubr.f32.mxu0 0.0
        %990 = vmatmul.mubr.f32.gmra.mrb[0].mxu0 %v918
        %v991 = vpop.f32.mrb[0].mxu0
        %v992 = vadd.f32 %v912, %v991
        %v993 = vpop.f32.mrb[0].mxu0
        %994 = vdwg.mxu0
        %v995 = vtanh.pop %v987
        %v996 = vmul.f32 %v995, 1.442695
        %v997 = vpow.pop %v996
        %v998 = vmul.f32 %v531, %v997
        %v999 = vadd.f32 %v998, %v992
        %v1000 = vadd.f32 %v766, %v995
        %s1001 = scalar_lea.vmem %s1, 96
        %v1002 = vld [vmem:[%s1001] sm:$0xff]
        %v1003 = vld [vmem:[%s1001 + $0x8] sm:$0xff]
        %v1004 = vld [vmem:[%s1001 + $0x10] sm:$0xff]
        %v1005 = vld [vmem:[%s1001 + $0x18] sm:$0xff]
        %s1006 = scalar_lea.vmem %s2, 96
        %v1007 = vld [vmem:[%s1006] sm:$0xff]
        %v1008 = vld [vmem:[%s1006 + $0x8] sm:$0xff]
        %v1009 = vld [vmem:[%s1006 + $0x10] sm:$0xff]
        %v1010 = vld [vmem:[%s1006 + $0x18] sm:$0xff]
        %1012 = vset.pattern.permute.xlu0 0
        %1013 = vperm.xlu0 %1012, %v1007
        %v1014 = vpop.permute.xlu0 %1013
        %1017 = vset.pattern.permute.xlu0 0
        %1018 = vperm.xlu0 %1017, %v1008
        %v1019 = vpop.permute.xlu0 %1018
        %1022 = vset.pattern.permute.xlu0 0
        %1023 = vperm.xlu0 %1022, %v1009
        %v1024 = vpop.permute.xlu0 %1023
        %1027 = vset.pattern.permute.xlu0 0
        %1028 = vperm.xlu0 %1027, %v1010
        %v1029 = vpop.permute.xlu0 %1028
        %v1032 = vsel %vm329, %v1002, 0
        %v1035 = vsel %vm329, %v1003, 0
        %v1038 = vsel %vm329, %v1004, 0
        %v1041 = vsel %vm329, %v1005, 0
        %1043 = vmatprep.subr.mxu0 0.0
        %1044 = vmatpush1.msra.mxu0 %v999
        %1045 = vmatprep.subr.mxu0 0.0
        %1046 = vmatpush1.msra.mxu0 0.0
        %1047 = vmatprep.subr.mxu0 0.0
        %1048 = vmatpush1.msra.mxu0 0.0
        %1049 = vmatprep.subr.mxu0 0.0
        %1050 = vmatpush1.msra.mxu0 0.0
        %1051 = vmatprep.subr.mxu0 0.0
        %1052 = vmatpush1.msra.mxu0 0.0
        %1053 = vmatprep.subr.mxu0 0.0
        %1054 = vmatpush1.msra.mxu0 0.0
        %1055 = vmatprep.subr.mxu0 0.0
        %1056 = vmatpush1.msra.mxu0 0.0
        %1057 = vmatprep.subr.mxu0 0.0
        %1058 = vmatpush1.msra.mxu0 0.0
        %1059 = vmatprep.subr.mxu0 0.0
        %1060 = vmatpush1.msra.mxu0 0.0
        %1061 = vmatprep.subr.mxu0 0.0
        %1062 = vmatpush1.msra.mxu0 0.0
        %1063 = vmatprep.subr.mxu0 0.0
        %1064 = vmatpush1.msra.mxu0 0.0
        %1065 = vmatprep.subr.mxu0 0.0
        %1066 = vmatpush1.msra.mxu0 0.0
        %1067 = vmatprep.subr.mxu0 0.0
        %1068 = vmatpush1.msra.mxu0 0.0
        %1069 = vmatprep.subr.mxu0 0.0
        %1070 = vmatpush1.msra.mxu0 0.0
        %1071 = vmatprep.subr.mxu0 0.0
        %1072 = vmatpush1.msra.mxu0 0.0
        %1073 = vmatprep.subr.mxu0 0.0
        %1074 = vmatpush1.msra.mxu0 0.0
        %1075 = vmatprep.subr.mxu0 0.0
        %1076 = vmatpush1.msra.mxu0 0.0
        %1077 = vmatprep.subr.mxu0 0.0
        %1078 = vmatpush1.msra.mxu0 0.0
        %1079 = vmatprep.subr.mxu0 0.0
        %1080 = vmatpush1.msra.mxu0 0.0
        %1081 = vmatprep.subr.mxu0 0.0
        %1082 = vmatpush1.msra.mxu0 0.0
        %1083 = vmatprep.subr.mxu0 0.0
        %1084 = vmatpush1.msra.mxu0 0.0
        %1085 = vmatprep.subr.mxu0 0.0
        %1086 = vmatpush1.msra.mxu0 0.0
        %1087 = vmatprep.subr.mxu0 0.0
        %1088 = vmatpush1.msra.mxu0 0.0
        %1089 = vmatprep.subr.mxu0 0.0
        %1090 = vmatpush1.msra.mxu0 0.0
        %1091 = vmatprep.subr.mxu0 0.0
        %1092 = vmatpush1.msra.mxu0 0.0
        %1093 = vmatprep.subr.mxu0 0.0
        %1094 = vmatpush1.msra.mxu0 0.0
        %1095 = vmatprep.subr.mxu0 0.0
        %1096 = vmatpush1.msra.mxu0 0.0
        %1097 = vmatprep.subr.mxu0 0.0
        %1098 = vmatpush1.msra.mxu0 0.0
        %1099 = vmatprep.subr.mxu0 0.0
        %1100 = vmatpush1.msra.mxu0 0.0
        %1101 = vmatprep.subr.mxu0 0.0
        %1102 = vmatpush1.msra.mxu0 0.0
        %1103 = vmatprep.subr.mxu0 0.0
        %1104 = vmatpush1.msra.mxu0 0.0
        %1105 = vmatprep.subr.mxu0 0.0
        %1106 = vmatpush1.msra.mxu0 0.0
        %1107 = vmatprep.mubr.f32.mxu0 0.0
        %1108 = vmatmul.mubr.f32.gmra.mrb[0].mxu0 %v1032
        %v1109 = vpop.f32.mrb[0].mxu0
        %v1110 = vadd.f32 %v1014, %v1109
        %v1111 = vpop.f32.mrb[0].mxu0
        %1112 = vmatprep.mubr.f32.mxu0 0.0
        %1113 = vmatmul.mubr.f32.gmra.mrb[0].mxu0 %v1035
        %v1114 = vpop.f32.mrb[0].mxu0
        %v1115 = vadd.f32 %v1019, %v1114
        %v1116 = vpop.f32.mrb[0].mxu0
        %1117 = vmatprep.mubr.f32.mxu0 0.0
        %1118 = vmatmul.mubr.f32.gmra.mrb[0].mxu0 %v1038
        %v1119 = vpop.f32.mrb[0].mxu0
        %v1120 = vadd.f32 %v1024, %v1119
        %v1121 = vpop.f32.mrb[0].mxu0
        %1122 = vmatprep.mubr.f32.mxu0 0.0
        %1123 = vmatmul.mubr.f32.gmra.mrb[0].mxu0 %v1041
        %v1124 = vpop.f32.mrb[0].mxu0
        %v1125 = vadd.f32 %v1029, %v1124
        %v1126 = vpop.f32.mrb[0].mxu0
        %1127 = vdwg.mxu0
        %v1128 = vtanh.pop %v1110
        %v1129 = vtanh.pop %v1115
        %v1130 = vtanh.pop %v1120
        %v1131 = vtanh.pop %v1125
        %s1132 = scalar_lea.vmem %s3, 48
        %v1133 = vld [vmem:[%s1132] sm:$0xff]
        %v1134 = vld [vmem:[%s1132 + $0x8] sm:$0xff]
        %s1135 = scalar_lea.vmem %s4, 48
        %v1136 = vld [vmem:[%s1135] sm:$0xff]
        %v1137 = vld [vmem:[%s1135 + $0x8] sm:$0xff]
        %1139 = vset.pattern.permute.xlu0 0
        %1140 = vperm.xlu0 %1139, %v1136
        %v1141 = vpop.permute.xlu0 %1140
        %1144 = vset.pattern.permute.xlu0 0
        %1145 = vperm.xlu0 %1144, %v1137
        %v1146 = vpop.permute.xlu0 %1145
        %v1149 = vsel %vm445, %v1133, 0
        %v1152 = vsel %vm445, %v1134, 0
        %1154 = vmatprep.subr.mxu0 0.0
        %1155 = vmatpush1.msra.mxu0 %v1128
        %1156 = vmatprep.subr.mxu0 0.0
        %1157 = vmatpush1.msra.mxu0 %v1129
        %1158 = vmatprep.subr.mxu0 0.0
        %1159 = vmatpush1.msra.mxu0 %v1130
        %1160 = vmatprep.subr.mxu0 0.0
        %1161 = vmatpush1.msra.mxu0 %v1131
        %1162 = vmatprep.subr.mxu0 0.0
        %1163 = vmatpush1.msra.mxu0 0.0
        %1164 = vmatprep.subr.mxu0 0.0
        %1165 = vmatpush1.msra.mxu0 0.0
        %1166 = vmatprep.subr.mxu0 0.0
        %1167 = vmatpush1.msra.mxu0 0.0
        %1168 = vmatprep.subr.mxu0 0.0
        %1169 = vmatpush1.msra.mxu0 0.0
        %1170 = vmatprep.subr.mxu0 0.0
        %1171 = vmatpush1.msra.mxu0 0.0
        %1172 = vmatprep.subr.mxu0 0.0
        %1173 = vmatpush1.msra.mxu0 0.0
        %1174 = vmatprep.subr.mxu0 0.0
        %1175 = vmatpush1.msra.mxu0 0.0
        %1176 = vmatprep.subr.mxu0 0.0
        %1177 = vmatpush1.msra.mxu0 0.0
        %1178 = vmatprep.subr.mxu0 0.0
        %1179 = vmatpush1.msra.mxu0 0.0
        %1180 = vmatprep.subr.mxu0 0.0
        %1181 = vmatpush1.msra.mxu0 0.0
        %1182 = vmatprep.subr.mxu0 0.0
        %1183 = vmatpush1.msra.mxu0 0.0
        %1184 = vmatprep.subr.mxu0 0.0
        %1185 = vmatpush1.msra.mxu0 0.0
        %1186 = vmatprep.subr.mxu0 0.0
        %1187 = vmatpush1.msra.mxu0 0.0
        %1188 = vmatprep.subr.mxu0 0.0
        %1189 = vmatpush1.msra.mxu0 0.0
        %1190 = vmatprep.subr.mxu0 0.0
        %1191 = vmatpush1.msra.mxu0 0.0
        %1192 = vmatprep.subr.mxu0 0.0
        %1193 = vmatpush1.msra.mxu0 0.0
        %1194 = vmatprep.subr.mxu0 0.0
        %1195 = vmatpush1.msra.mxu0 0.0
        %1196 = vmatprep.subr.mxu0 0.0
        %1197 = vmatpush1.msra.mxu0 0.0
        %1198 = vmatprep.subr.mxu0 0.0
        %1199 = vmatpush1.msra.mxu0 0.0
        %1200 = vmatprep.subr.mxu0 0.0
        %1201 = vmatpush1.msra.mxu0 0.0
        %1202 = vmatprep.subr.mxu0 0.0
        %1203 = vmatpush1.msra.mxu0 0.0
        %1204 = vmatprep.subr.mxu0 0.0
        %1205 = vmatpush1.msra.mxu0 0.0
        %1206 = vmatprep.subr.mxu0 0.0
        %1207 = vmatpush1.msra.mxu0 0.0
        %1208 = vmatprep.subr.mxu0 0.0
        %1209 = vmatpush1.msra.mxu0 0.0
        %1210 = vmatprep.subr.mxu0 0.0
        %1211 = vmatpush1.msra.mxu0 0.0
        %1212 = vmatprep.subr.mxu0 0.0
        %1213 = vmatpush1.msra.mxu0 0.0
        %1214 = vmatprep.subr.mxu0 0.0
        %1215 = vmatpush1.msra.mxu0 0.0
        %1216 = vmatprep.subr.mxu0 0.0
        %1217 = vmatpush1.msra.mxu0 0.0
        %1218 = vmatprep.mubr.f32.mxu0 0.0
        %1219 = vmatmul.mubr.f32.gmra.mrb[0].mxu0 %v1149
        %v1220 = vpop.f32.mrb[0].mxu0
        %v1221 = vadd.f32 %v1141, %v1220
        %v1222 = vpop.f32.mrb[0].mxu0
        %1223 = vmatprep.mubr.f32.mxu0 0.0
        %1224 = vmatmul.mubr.f32.gmra.mrb[0].mxu0 %v1152
        %v1225 = vpop.f32.mrb[0].mxu0
        %v1226 = vadd.f32 %v1146, %v1225
        %v1227 = vpop.f32.mrb[0].mxu0
        %1228 = vdwg.mxu0
        %v1229 = vtanh.pop %v1221
        %v1230 = vmul.f32 %v1229, 1.442695
        %v1231 = vpow.pop %v1230
        %v1232 = vmul.f32 %v765, %v1231
        %v1233 = vadd.f32 %v1232, %v1226
        %v1234 = vadd.f32 %v1000, %v1229
        %1235 = vst [vmem:[%s291] sm:$0xff] %v1233
        %1236 = vst [vmem:[%s291 + $0x8] sm:$0xff] %v999
        %v1237 = vmul.f32 %v1233, %v1233
        %v1238 = vmul.f32 %v999, %v999
        %v1239 = vadd.f32 %v1237, %v1238
        %v1240 = vrot.slane %v1239, 4
        %v1241 = vadd.f32 %v1239, %v1240
        %v1242 = vrot.slane %v1241, 2
        %v1243 = vadd.f32 %v1241, %v1242
        %v1244 = vrot.slane %v1243, 1
        %v1245 = vadd.f32 %v1243, %v1244
        %v1246 = vmul.f32 %v1245, -0.5
        %v1247 = vsub.f32 %v1246, 14.703016
        %v1248 = vrot.slane %v1234, 4
        %v1249 = vadd.f32 %v1234, %v1248
        %v1250 = vrot.slane %v1249, 2
        %v1251 = vadd.f32 %v1249, %v1250
        %v1252 = vrot.slane %v1251, 1
        %v1253 = vadd.f32 %v1251, %v1252
        %vm1254 = vcmask 1040384
        %v1255 = vsel %vm1254, %v1247, %v1253
        %1256 = vst [vmem:[%s298] sm:$0x3] %v1255
        %s1257 = sand.u32 %s142, 1
        %s1258 = scalar_lea.sflag [#allocation4], %s1257
        %s1259 = sand.u32 %s142, 1
        %s1260 = smul.addr %s1259, 16
        %s1261 = scalar_lea.vmem [#allocation3], %s1260
        %s1262 = sand.u32 %s168, 1
        %s1263 = scalar_lea.sflag [#allocation6], %s1262
        %s1264 = sand.u32 %s168, 1
        %s1265 = smul.addr %s1264, 2
        %s1266 = scalar_lea.vmem [#allocation5], %s1265
        // Predicated region
        $region79: #{tpu_custom_call.1} parent=73 // pred_check
          %p1267 = pneg %p152
        $region80: #{tpu_custom_call.1} parent=73 // pred_check_branch
          %1269 = sbr.rel (%p1267) target = $region82
        $region81: #{tpu_custom_call.1} parent=73 // pred_region
          %s1271 = ssub.s32 256, 256
          %1272 = vsyncadd %s1258, %s1271
          %s1273 = smul.addr %s24, 128
          %s1274 = scalar_lea.hbm %s5, %s1273
          %s1275 = sshll.u32 %s1261, 4
          %s1276 = int_to_ptr.vmem [resolvable:$true] %s1275
          %1281 = dma.vmem_to_hbm [thread:$0]  %s1276, 256, %s1274, %s1258, 128, 256, 8
        $region82: #{tpu_custom_call.1} parent=73 // pred_fallthru
          _
        // Predicated region
        $region83: #{tpu_custom_call.1} parent=73 // pred_check
          %p1282 = pneg %p178
        $region84: #{tpu_custom_call.1} parent=73 // pred_check_branch
          %1284 = sbr.rel (%p1282) target = $region86
        $region85: #{tpu_custom_call.1} parent=73 // pred_region
          %s1286 = ssub.s32 32, 32
          %1287 = vsyncadd %s1263, %s1286
          %s1288 = smul.addr %s24, 32
          %s1289 = scalar_lea.hbm %s6, %s1288
          %s1291 = sshll.u32 %s1266, 4
          %s1292 = int_to_ptr.vmem [resolvable:$true] %s1291
          %1294 = dma.vmem_to_hbm [thread:$0]  %s1292, 32, %s1289, %s1263
        $region86: #{tpu_custom_call.1} parent=73 // pred_fallthru
          _
      $region74: #{tpu_custom_call.1} parent=5 // pred_fallthru
        _
      %p1295 = scmp.le.s32.totalorder 2, %s19
      // Predicated region
      $region87: #{tpu_custom_call.1} parent=5 // pred_check
        %p1296 = pneg %p1295
      $region88: #{tpu_custom_call.1} parent=5 // pred_check_branch
        %1298 = sbr.rel (%p1296) target = $region90
      $region89: #{tpu_custom_call.1} parent=5 // pred_region
        %s1299 = ssub.s32 %s19, 2
        // Predicated region
        $region91: #{tpu_custom_call.1} parent=89 // pred_check
          %p1300 = pneg %p158
        $region92: #{tpu_custom_call.1} parent=89 // pred_check_branch
          %1302 = sbr.rel (%p1300) target = $region94
        $region93: #{tpu_custom_call.1} parent=89 // pred_region
          %s1303 = sand.u32 %s143, 1
          %s1304 = scalar_lea.sflag [#allocation4], %s1303
          %s1305 = sand.u32 %s143, 1
          %s1306 = smul.addr %s1305, 16
          %s1307 = scalar_lea.vmem [#allocation3], %s1306
          %1308 = dma.done %s1304, 256
        $region94: #{tpu_custom_call.1} parent=89 // pred_fallthru
          _
        // Predicated region
        $region95: #{tpu_custom_call.1} parent=89 // pred_check
          %p1309 = pneg %p184
        $region96: #{tpu_custom_call.1} parent=89 // pred_check_branch
          %1311 = sbr.rel (%p1309) target = $region98
        $region97: #{tpu_custom_call.1} parent=89 // pred_region
          %s1312 = sand.u32 %s169, 1
          %s1313 = scalar_lea.sflag [#allocation6], %s1312
          %s1314 = sand.u32 %s169, 1
          %s1315 = smul.addr %s1314, 2
          %s1316 = scalar_lea.vmem [#allocation5], %s1315
          %1317 = dma.done %s1313, 32
        $region98: #{tpu_custom_call.1} parent=89 // pred_fallthru
          _
      $region90: #{tpu_custom_call.1} parent=5 // pred_fallthru
        _
    $region6: #{tpu_custom_call.1} parent=1 // loop_footer
      %s23 = sadd.s32 1, %s19
    $region7: #{tpu_custom_call.1} parent=1 // loop_footer_branch
      %18 = sbr.rel target = $region3
    $region8: #{tpu_custom_call.1} parent=1 // loop_exit
      _
    %1318 = vsyncpa [#allocation4], 1
    %s1319 = scalar_lea.sflag [#allocation4], 1
    %1320 = vsyncpa %s1319, 1
    %1321 = vsyncpa [#allocation6], 1
    %s1322 = scalar_lea.sflag [#allocation6], 1
    %1323 = vsyncpa %s1322, 1

</llo_original>
